<compile_context>
chip_gen: v5e
topology: v5e:2x2
jax: 0.10.0
libtpu: 0.0.40
codegen_flags: <defaults>
</compile_context>

<pallas_src>
import functools

import jax
import jax.numpy as jnp
from jax.experimental import pallas as pl
from jax.experimental.pallas import tpu as pltpu

_MAX_TILE_M = 256      # row-tile for (rows, features) slabs (use full slab if smaller)
_LN_EPS = 1e-12        # BEiT layernorm eps


def _round_up(x, m):
    return (x + m - 1) // m * m


def _row_tile(m):
    return m if m <= _MAX_TILE_M else _MAX_TILE_M


def _gelu(x):
    # TODO(synk): HF BEiT uses exact erf GELU; tanh approximation kept (tiny drift).
    return 0.5 * x * (1.0 + jnp.tanh(0.7978845608028654 * (x + 0.044715 * x * x * x)))


# ----------------------------------------------------------------------------
# Pallas kernels
# ----------------------------------------------------------------------------
def _linear_kernel(x_ref, w_ref, b_ref, o_ref):
    y = jnp.dot(x_ref[...].astype(jnp.bfloat16), w_ref[...],
                preferred_element_type=jnp.float32)
    o_ref[...] = y + b_ref[...]


def _ln_linear_kernel(x_ref, g_ref, bln_ref, w_ref, b_ref, o_ref, *, eps):
    # out = LayerNorm(x) @ W + b  (LN fused into the matmul kernel)
    x = x_ref[...]
    mu = jnp.mean(x, axis=-1, keepdims=True)
    var = jnp.mean((x - mu) * (x - mu), axis=-1, keepdims=True)
    h = (x - mu) * jax.lax.rsqrt(var + eps) * g_ref[...] + bln_ref[...]
    y = jnp.dot(h.astype(jnp.bfloat16), w_ref[...],
                preferred_element_type=jnp.float32)
    o_ref[...] = y + b_ref[...]


def _ln_mlp_res_kernel(x_ref, g_ref, bln_ref, w1_ref, b1_ref, w2_ref, b2_ref,
                       gam_ref, o_ref, *, eps):
    # out = x + gamma * FC2(GELU(FC1(LayerNorm(x))))   (whole MLP block fused)
    x = x_ref[...]
    mu = jnp.mean(x, axis=-1, keepdims=True)
    var = jnp.mean((x - mu) * (x - mu), axis=-1, keepdims=True)
    h = (x - mu) * jax.lax.rsqrt(var + eps) * g_ref[...] + bln_ref[...]
    h1 = jnp.dot(h.astype(jnp.bfloat16), w1_ref[...],
                 preferred_element_type=jnp.float32) + b1_ref[...]
    h1 = _gelu(h1)
    h2 = jnp.dot(h1.astype(jnp.bfloat16), w2_ref[...],
                 preferred_element_type=jnp.float32) + b2_ref[...]
    o_ref[...] = x + gam_ref[...] * h2


def _attn_proj_res_kernel(qkv_ref, res_ref, w_ref, b_ref, gam_ref, o_ref,
                          *, nH, dh, scale, s_valid):
    # One batch element (all heads) per grid step.
    # Q/K/V are sliced out of the packed (S_pad, 3H) QKV block in-kernel (no host
    # transposes), scores use dot_general contracting the last dims (no k.T),
    # and the output projection + layer-scale + residual are fused in.
    H = nH * dh
    qkv = qkv_ref[0]                      # (S_pad, 3H) f32
    S = qkv.shape[0]
    w = w_ref[...]                        # (H, H) bf16
    acc = jnp.zeros((S, H), jnp.float32)
    for h in range(nH):                   # static unroll over heads
        qh = qkv[:, h * dh:(h + 1) * dh].astype(jnp.bfloat16)
        kh = qkv[:, H + h * dh:H + (h + 1) * dh].astype(jnp.bfloat16)
        vh = qkv[:, 2 * H + h * dh:2 * H + (h + 1) * dh].astype(jnp.bfloat16)
        s = jax.lax.dot_general(qh, kh, (((1,), (1,)), ((), ())),
                                preferred_element_type=jnp.float32) * scale
        kidx = jax.lax.broadcasted_iota(jnp.int32, s.shape, 1)
        s = jnp.where(kidx < s_valid, s, -1e30)      # mask padded key positions
        m = jnp.max(s, axis=-1, keepdims=True)
        p = jnp.exp(s - m)
        denom = jnp.sum(p, axis=-1, keepdims=True)
        p = (p * pl.reciprocal(denom, approx=True)).astype(jnp.bfloat16)
        ctx = jnp.dot(p, vh, preferred_element_type=jnp.float32)      # (S, dh)
        # fused output projection: sum_h ctx_h @ W_proj[h*dh:(h+1)*dh, :]
        acc = acc + jnp.dot(ctx.astype(jnp.bfloat16), w[h * dh:(h + 1) * dh, :],
                            preferred_element_type=jnp.float32)
    y = acc + b_ref[...]
    o_ref[0] = res_ref[0] + gam_ref[...] * y


def _pool_head_kernel(x_ref, g_ref, bln_ref, w_ref, b_ref, o_ref, *, eps, n_patch):
    # BEiT pooler (LayerNorm of patch-token mean, cls + padding excluded)
    # fused with the nn.Linear classification head (lane-padded output).
    x = x_ref[...]                                          # (B, S_pad, H)
    sidx = jax.lax.broadcasted_iota(jnp.int32, x.shape, 1)
    mask = jnp.logical_and(sidx >= 1, sidx <= n_patch).astype(jnp.float32)
    pooled = jnp.sum(x * mask, axis=1) * (1.0 / float(n_patch))   # (B, H)
    mu = jnp.mean(pooled, axis=-1, keepdims=True)
    var = jnp.mean((pooled - mu) * (pooled - mu), axis=-1, keepdims=True)
    h = (pooled - mu) * jax.lax.rsqrt(var + eps) * g_ref[...] + bln_ref[...]
    o_ref[...] = jnp.dot(h.astype(jnp.bfloat16), w_ref[...],
                         preferred_element_type=jnp.float32) + b_ref[...]


# ----------------------------------------------------------------------------
# pallas_call wrappers (row-tiled grids, parallel row axis)
# ----------------------------------------------------------------------------
def _linear(x, w, b):
    M, K = x.shape
    N = w.shape[1]
    tm = _row_tile(M)
    return pl.pallas_call(
        _linear_kernel,
        grid=(pl.cdiv(M, tm),),
        in_specs=[pl.BlockSpec((tm, K), lambda i: (i, 0)),
                  pl.BlockSpec((K, N), lambda i: (0, 0)),
                  pl.BlockSpec((1, N), lambda i: (0, 0))],
        out_specs=pl.BlockSpec((tm, N), lambda i: (i, 0)),
        out_shape=jax.ShapeDtypeStruct((M, N), jnp.float32),
        compiler_params=pltpu.CompilerParams(dimension_semantics=("parallel",)),
    )(x, w, b.reshape(1, N))


def _ln_linear(x, g, bln, w, b, eps=_LN_EPS):
    M, K = x.shape
    N = w.shape[1]
    tm = _row_tile(M)
    return pl.pallas_call(
        functools.partial(_ln_linear_kernel, eps=eps),
        grid=(pl.cdiv(M, tm),),
        in_specs=[pl.BlockSpec((tm, K), lambda i: (i, 0)),
                  pl.BlockSpec((1, K), lambda i: (0, 0)),
                  pl.BlockSpec((1, K), lambda i: (0, 0)),
                  pl.BlockSpec((K, N), lambda i: (0, 0)),
                  pl.BlockSpec((1, N), lambda i: (0, 0))],
        out_specs=pl.BlockSpec((tm, N), lambda i: (i, 0)),
        out_shape=jax.ShapeDtypeStruct((M, N), jnp.float32),
        compiler_params=pltpu.CompilerParams(dimension_semantics=("parallel",)),
    )(x, g.reshape(1, K), bln.reshape(1, K), w, b.reshape(1, N))


def _ln_mlp_res(x, g, bln, w1, b1, w2, b2, gamma, eps=_LN_EPS):
    M, H = x.shape
    F = w1.shape[1]
    tm = _row_tile(M)
    return pl.pallas_call(
        functools.partial(_ln_mlp_res_kernel, eps=eps),
        grid=(pl.cdiv(M, tm),),
        in_specs=[pl.BlockSpec((tm, H), lambda i: (i, 0)),
                  pl.BlockSpec((1, H), lambda i: (0, 0)),
                  pl.BlockSpec((1, H), lambda i: (0, 0)),
                  pl.BlockSpec((H, F), lambda i: (0, 0)),
                  pl.BlockSpec((1, F), lambda i: (0, 0)),
                  pl.BlockSpec((F, H), lambda i: (0, 0)),
                  pl.BlockSpec((1, H), lambda i: (0, 0)),
                  pl.BlockSpec((1, H), lambda i: (0, 0))],
        out_specs=pl.BlockSpec((tm, H), lambda i: (i, 0)),
        out_shape=jax.ShapeDtypeStruct((M, H), jnp.float32),
        compiler_params=pltpu.CompilerParams(dimension_semantics=("parallel",)),
    )(x, g.reshape(1, H), bln.reshape(1, H), w1, b1.reshape(1, F),
      w2, b2.reshape(1, H), gamma.reshape(1, H))


def _attn_proj_res(qkv, res, w, b, gamma, *, nH, dh, scale, s_valid):
    B, S_pad, threeH = qkv.shape
    H = nH * dh
    return pl.pallas_call(
        functools.partial(_attn_proj_res_kernel, nH=nH, dh=dh, scale=scale,
                          s_valid=s_valid),
        grid=(B,),
        in_specs=[pl.BlockSpec((1, S_pad, threeH), lambda i: (i, 0, 0)),
                  pl.BlockSpec((1, S_pad, H), lambda i: (i, 0, 0)),
                  pl.BlockSpec((H, H), lambda i: (0, 0)),
                  pl.BlockSpec((1, H), lambda i: (0, 0)),
                  pl.BlockSpec((1, H), lambda i: (0, 0))],
        out_specs=pl.BlockSpec((1, S_pad, H), lambda i: (i, 0, 0)),
        out_shape=jax.ShapeDtypeStruct((B, S_pad, H), jnp.float32),
        compiler_params=pltpu.CompilerParams(dimension_semantics=("parallel",)),
    )(qkv, res, w, b.reshape(1, H), gamma.reshape(1, H))


def _pool_head(x, g, bln, w, b, *, n_patch, eps=_LN_EPS):
    B, S_pad, H = x.shape
    Np = w.shape[1]
    return pl.pallas_call(
        functools.partial(_pool_head_kernel, eps=eps, n_patch=n_patch),
        out_shape=jax.ShapeDtypeStruct((B, Np), jnp.float32),
    )(x, g.reshape(1, H), bln.reshape(1, H), w, b.reshape(1, Np))


# ----------------------------------------------------------------------------
# synthetic, deterministic parameter init (shapes follow a tiny BEiT config)
# ----------------------------------------------------------------------------
def init_params(key, *, channels, patch, hidden, heads, layers, mlp, num_labels):
    ks = iter(jax.random.split(key, 4 + 4 * layers))

    def w_init(shape):
        # matmul weights stored in bf16 for the MXU (f32 accumulation in-kernel)
        return (0.02 * jax.random.normal(next(ks), shape)).astype(jnp.bfloat16)

    num_labels_pad = _round_up(num_labels, 128)   # lane-dense head output
    head_w = jnp.zeros((hidden, num_labels_pad), jnp.float32)
    head_w = head_w.at[:, :num_labels].set(
        0.02 * jax.random.normal(next(ks), (hidden, num_labels)))

    p = {
        "patch": patch,
        "hidden": hidden,
        "heads": heads,
        "num_labels": num_labels,
        "pe_w": w_init((channels * patch * patch, hidden)),
        "pe_b": jnp.zeros((hidden,), jnp.float32),
        "cls": (0.02 * jax.random.normal(next(ks), (1, 1, hidden))).astype(jnp.float32),
        "pool_ln_g": jnp.ones((hidden,), jnp.float32),
        "pool_ln_b": jnp.zeros((hidden,), jnp.float32),
        "head_w": head_w.astype(jnp.bfloat16),
        "head_b": jnp.zeros((num_labels_pad,), jnp.float32),
        "layers": [],
    }
    for _ in range(layers):
        p["layers"].append({
            "ln1_g": jnp.ones((hidden,), jnp.float32),
            "ln1_b": jnp.zeros((hidden,), jnp.float32),
            "qkv_w": w_init((hidden, 3 * hidden)),
            "qkv_b": jnp.zeros((3 * hidden,), jnp.float32),
            "proj_w": w_init((hidden, hidden)),
            "proj_b": jnp.zeros((hidden,), jnp.float32),
            "gamma1": 0.1 * jnp.ones((hidden,), jnp.float32),   # BEiT layer-scale
            "ln2_g": jnp.ones((hidden,), jnp.float32),
            "ln2_b": jnp.zeros((hidden,), jnp.float32),
            "fc1_w": w_init((hidden, mlp)),
            "fc1_b": jnp.zeros((mlp,), jnp.float32),
            "fc2_w": w_init((mlp, hidden)),
            "fc2_b": jnp.zeros((hidden,), jnp.float32),
            "gamma2": 0.1 * jnp.ones((hidden,), jnp.float32),
        })
    return p


# ----------------------------------------------------------------------------
# forward pass (mirrors BEiT.forward: backbone -> pooled_output -> linear)
# ----------------------------------------------------------------------------
def beit_forward(params, pixel_values):
    B, C, Hi, Wi = pixel_values.shape
    P = params["patch"]
    H = params["hidden"]
    nH = params["heads"]
    dh = H // nH

    # patchify (conv with stride=patch expressed as a matmul over flattened patches)
    x = pixel_values.reshape(B, C, Hi // P, P, Wi // P, P)
    x = x.transpose(0, 2, 4, 1, 3, 5).reshape(B, (Hi // P) * (Wi // P), C * P * P)
    npatch = x.shape[1]

    emb = _linear(x.reshape(B * npatch, C * P * P), params["pe_w"], params["pe_b"])
    emb = emb.reshape(B, npatch, H)
    cls = jnp.broadcast_to(params["cls"], (B, 1, H))
    S = npatch + 1
    S_pad = _round_up(S, 8)              # pad seq once; padded keys masked in attention
    pad = jnp.zeros((B, S_pad - S, H), jnp.float32)
    seq = jnp.concatenate([cls, emb, pad], axis=1)            # (B, S_pad, H)
    xf = seq.reshape(B * S_pad, H)

    scale = 1.0 / (dh ** 0.5)
    for lyr in params["layers"]:
        # --- attention block: LN+QKV, then MHA+proj+layer-scale+residual ---
        # TODO(synk): BEiT relative position bias omitted (synthetic weights).
        qkv = _ln_linear(xf, lyr["ln1_g"], lyr["ln1_b"], lyr["qkv_w"], lyr["qkv_b"])
        xf = _attn_proj_res(qkv.reshape(B, S_pad, 3 * H),
                            xf.reshape(B, S_pad, H),
                            lyr["proj_w"], lyr["proj_b"], lyr["gamma1"],
                            nH=nH, dh=dh, scale=scale, s_valid=S)
        xf = xf.reshape(B * S_pad, H)

        # --- MLP block: LN+FC1+GELU+FC2+layer-scale+residual in one kernel ---
        xf = _ln_mlp_res(xf, lyr["ln2_g"], lyr["ln2_b"],
                         lyr["fc1_w"], lyr["fc1_b"],
                         lyr["fc2_w"], lyr["fc2_b"], lyr["gamma2"])

    # BEiT pooler (mean of patch tokens, cls/padding excluded) + LN + classifier head,
    # fused; nn.Dropout(0.1) is identity at inference.
    logits_p = _pool_head(xf.reshape(B, S_pad, H),
                          params["pool_ln_g"], params["pool_ln_b"],
                          params["head_w"], params["head_b"], n_patch=npatch)
    return logits_p[:, :params["num_labels"]]


# ----------------------------------------------------------------------------
if __name__ == "__main__":
    key = jax.random.PRNGKey(0)
    k_param, k_input = jax.random.split(key)

    # tiny BEiT config
    B, C, IMG = 2, 3, 16
    PATCH, HIDDEN, HEADS, LAYERS, MLP, NUM_LABELS = 4, 32, 4, 2, 64, 5

    params = init_params(
        k_param,
        channels=C, patch=PATCH, hidden=HIDDEN, heads=HEADS,
        layers=LAYERS, mlp=MLP, num_labels=NUM_LABELS,
    )
    pixel_values = jax.random.normal(k_input, (B, C, IMG, IMG), dtype=jnp.float32)

    fwd = jax.jit(functools.partial(beit_forward, params))
    logits = fwd(pixel_values)
    jax.block_until_ready(logits)
    assert logits.shape == (B, NUM_LABELS)
    print("KERNEL_OK")
</pallas_src>

<mosaic_0001>
module attributes {stable_mosaic.version = 11 : i64} {
  func.func @_attn_proj_res_kernel(%arg0: i32, %arg1: memref<1x24x96xf32, #tpu.memory_space<vmem>>, %arg2: memref<1x24x32xf32, #tpu.memory_space<vmem>>, %arg3: memref<32x32xbf16, #tpu.memory_space<vmem>>, %arg4: memref<1x32xf32, #tpu.memory_space<vmem>>, %arg5: memref<1x32xf32, #tpu.memory_space<vmem>>, %arg6: memref<1x24x32xf32, #tpu.memory_space<vmem>>) attributes {dimension_semantics = [#tpu.dimension_semantics<parallel>], iteration_bounds = array<i64: 2>, scalar_prefetch = 0 : i64, scratch_operands = 0 : i64, tpu.core_type = #tpu.core_type<tc>, window_params = [{transform_indices = @transform_0, window_bounds = array<i64: 1, 24, 96>}, {transform_indices = @transform_1, window_bounds = array<i64: 1, 24, 32>}, {pipeline_mode = #tpu.pipeline_mode<synchronous>, transform_indices = @transform_2, window_bounds = array<i64: 32, 32>}, {pipeline_mode = #tpu.pipeline_mode<synchronous>, transform_indices = @transform_3, window_bounds = array<i64: 1, 32>}, {pipeline_mode = #tpu.pipeline_mode<synchronous>, transform_indices = @transform_4, window_bounds = array<i64: 1, 32>}, {transform_indices = @transform_5, window_bounds = array<i64: 1, 24, 32>}]} {
    %c0 = arith.constant 0 : index
    %c0_0 = arith.constant 0 : index
    %c0_1 = arith.constant 0 : index
    %0 = vector.load %arg1[%c0, %c0_0, %c0_1] : memref<1x24x96xf32, #tpu.memory_space<vmem>>, vector<1x24x96xf32>
    %1 = vector.shape_cast %0 : vector<1x24x96xf32> to vector<24x96xf32>
    %c0_2 = arith.constant 0 : index
    %c0_3 = arith.constant 0 : index
    %2 = vector.load %arg3[%c0_2, %c0_3] : memref<32x32xbf16, #tpu.memory_space<vmem>>, vector<32x32xbf16>
    %cst = arith.constant 0.000000e+00 : f32
    %3 = vector.broadcast %cst : f32 to vector<24x32xf32>
    %4 = vector.extract_strided_slice %1 {offsets = [0, 0], sizes = [24, 8], strides = [1, 1]} : vector<24x96xf32> to vector<24x8xf32>
    %5 = arith.truncf %4 : vector<24x8xf32> to vector<24x8xbf16>
    %6 = vector.extract_strided_slice %1 {offsets = [0, 32], sizes = [24, 8], strides = [1, 1]} : vector<24x96xf32> to vector<24x8xf32>
    %7 = arith.truncf %6 : vector<24x8xf32> to vector<24x8xbf16>
    %8 = vector.extract_strided_slice %1 {offsets = [0, 64], sizes = [24, 8], strides = [1, 1]} : vector<24x96xf32> to vector<24x8xf32>
    %9 = arith.truncf %8 : vector<24x8xf32> to vector<24x8xbf16>
    %cst_4 = arith.constant dense<0.000000e+00> : vector<24x24xf32>
    %10 = tpu.matmul %5, %7, %cst_4 {dimension_numbers = #tpu.dot_dimension_numbers<[1], [1], [0], [0], [0, 0, 1, 0], [], []>} : vector<24x8xbf16>, vector<24x8xbf16>, vector<24x24xf32> -> vector<24x24xf32>
    %cst_5 = arith.constant 0.353553385 : f32
    %11 = vector.broadcast %cst_5 : f32 to vector<24x24xf32>
    %12 = arith.mulf %10, %11 : vector<24x24xf32>
    %13 = tpu.iota {dimensions = array<i32: 1>} : vector<24x24xi32>
    %c17_i32 = arith.constant 17 : i32
    %14 = vector.broadcast %c17_i32 : i32 to vector<24x24xi32>
    %15 = arith.cmpi slt, %13, %14 : vector<24x24xi32>
    %cst_6 = arith.constant -1.000000e+30 : f32
    %16 = vector.broadcast %cst_6 : f32 to vector<24x24xf32>
    %17 = arith.select %15, %12, %16 : vector<24x24xi1>, vector<24x24xf32>
    %cst_7 = arith.constant dense<0xFF800000> : vector<24xf32>
    %18 = vector.multi_reduction <maximumf>, %17, %cst_7 [1] : vector<24x24xf32> to vector<24xf32>
    %19 = vector.shape_cast %18 : vector<24xf32> to vector<24x1xf32>
    %20 = vector.broadcast %19 : vector<24x1xf32> to vector<24x24xf32>
    %21 = arith.subf %17, %20 : vector<24x24xf32>
    %22 = math.exp %21 : vector<24x24xf32>
    %cst_8 = arith.constant dense<0.000000e+00> : vector<24xf32>
    %23 = vector.multi_reduction <add>, %22, %cst_8 [1] : vector<24x24xf32> to vector<24xf32>
    %24 = vector.shape_cast %23 : vector<24xf32> to vector<24x1xf32>
    %25 = tpu.reciprocal %24 {approx = true} : vector<24x1xf32> -> vector<24x1xf32>
    %26 = vector.broadcast %25 : vector<24x1xf32> to vector<24x24xf32>
    %27 = arith.mulf %22, %26 : vector<24x24xf32>
    %28 = arith.truncf %27 : vector<24x24xf32> to vector<24x24xbf16>
    %cst_9 = arith.constant dense<0.000000e+00> : vector<24x8xf32>
    %29 = tpu.matmul %28, %9, %cst_9 {dimension_numbers = #tpu.dot_dimension_numbers<[1], [0], [0], [1], [0, 0, 1, 1], [], []>} : vector<24x24xbf16>, vector<24x8xbf16>, vector<24x8xf32> -> vector<24x8xf32>
    %30 = arith.truncf %29 : vector<24x8xf32> to vector<24x8xbf16>
    %31 = vector.extract_strided_slice %2 {offsets = [0, 0], sizes = [8, 32], strides = [1, 1]} : vector<32x32xbf16> to vector<8x32xbf16>
    %cst_10 = arith.constant dense<0.000000e+00> : vector<24x32xf32>
    %32 = tpu.matmul %30, %31, %cst_10 {dimension_numbers = #tpu.dot_dimension_numbers<[1], [0], [0], [1], [0, 0, 1, 1], [], []>} : vector<24x8xbf16>, vector<8x32xbf16>, vector<24x32xf32> -> vector<24x32xf32>
    %33 = arith.addf %3, %32 : vector<24x32xf32>
    %34 = vector.extract_strided_slice %1 {offsets = [0, 8], sizes = [24, 8], strides = [1, 1]} : vector<24x96xf32> to vector<24x8xf32>
    %35 = arith.truncf %34 : vector<24x8xf32> to vector<24x8xbf16>
    %36 = vector.extract_strided_slice %1 {offsets = [0, 40], sizes = [24, 8], strides = [1, 1]} : vector<24x96xf32> to vector<24x8xf32>
    %37 = arith.truncf %36 : vector<24x8xf32> to vector<24x8xbf16>
    %38 = vector.extract_strided_slice %1 {offsets = [0, 72], sizes = [24, 8], strides = [1, 1]} : vector<24x96xf32> to vector<24x8xf32>
    %39 = arith.truncf %38 : vector<24x8xf32> to vector<24x8xbf16>
    %cst_11 = arith.constant dense<0.000000e+00> : vector<24x24xf32>
    %40 = tpu.matmul %35, %37, %cst_11 {dimension_numbers = #tpu.dot_dimension_numbers<[1], [1], [0], [0], [0, 0, 1, 0], [], []>} : vector<24x8xbf16>, vector<24x8xbf16>, vector<24x24xf32> -> vector<24x24xf32>
    %cst_12 = arith.constant 0.353553385 : f32
    %41 = vector.broadcast %cst_12 : f32 to vector<24x24xf32>
    %42 = arith.mulf %40, %41 : vector<24x24xf32>
    %43 = tpu.iota {dimensions = array<i32: 1>} : vector<24x24xi32>
    %c17_i32_13 = arith.constant 17 : i32
    %44 = vector.broadcast %c17_i32_13 : i32 to vector<24x24xi32>
    %45 = arith.cmpi slt, %43, %44 : vector<24x24xi32>
    %cst_14 = arith.constant -1.000000e+30 : f32
    %46 = vector.broadcast %cst_14 : f32 to vector<24x24xf32>
    %47 = arith.select %45, %42, %46 : vector<24x24xi1>, vector<24x24xf32>
    %cst_15 = arith.constant dense<0xFF800000> : vector<24xf32>
    %48 = vector.multi_reduction <maximumf>, %47, %cst_15 [1] : vector<24x24xf32> to vector<24xf32>
    %49 = vector.shape_cast %48 : vector<24xf32> to vector<24x1xf32>
    %50 = vector.broadcast %49 : vector<24x1xf32> to vector<24x24xf32>
    %51 = arith.subf %47, %50 : vector<24x24xf32>
    %52 = math.exp %51 : vector<24x24xf32>
    %cst_16 = arith.constant dense<0.000000e+00> : vector<24xf32>
    %53 = vector.multi_reduction <add>, %52, %cst_16 [1] : vector<24x24xf32> to vector<24xf32>
    %54 = vector.shape_cast %53 : vector<24xf32> to vector<24x1xf32>
    %55 = tpu.reciprocal %54 {approx = true} : vector<24x1xf32> -> vector<24x1xf32>
    %56 = vector.broadcast %55 : vector<24x1xf32> to vector<24x24xf32>
    %57 = arith.mulf %52, %56 : vector<24x24xf32>
    %58 = arith.truncf %57 : vector<24x24xf32> to vector<24x24xbf16>
    %cst_17 = arith.constant dense<0.000000e+00> : vector<24x8xf32>
    %59 = tpu.matmul %58, %39, %cst_17 {dimension_numbers = #tpu.dot_dimension_numbers<[1], [0], [0], [1], [0, 0, 1, 1], [], []>} : vector<24x24xbf16>, vector<24x8xbf16>, vector<24x8xf32> -> vector<24x8xf32>
    %60 = arith.truncf %59 : vector<24x8xf32> to vector<24x8xbf16>
    %61 = vector.extract_strided_slice %2 {offsets = [8, 0], sizes = [8, 32], strides = [1, 1]} : vector<32x32xbf16> to vector<8x32xbf16>
    %cst_18 = arith.constant dense<0.000000e+00> : vector<24x32xf32>
    %62 = tpu.matmul %60, %61, %cst_18 {dimension_numbers = #tpu.dot_dimension_numbers<[1], [0], [0], [1], [0, 0, 1, 1], [], []>} : vector<24x8xbf16>, vector<8x32xbf16>, vector<24x32xf32> -> vector<24x32xf32>
    %63 = arith.addf %33, %62 : vector<24x32xf32>
    %64 = vector.extract_strided_slice %1 {offsets = [0, 16], sizes = [24, 8], strides = [1, 1]} : vector<24x96xf32> to vector<24x8xf32>
    %65 = arith.truncf %64 : vector<24x8xf32> to vector<24x8xbf16>
    %66 = vector.extract_strided_slice %1 {offsets = [0, 48], sizes = [24, 8], strides = [1, 1]} : vector<24x96xf32> to vector<24x8xf32>
    %67 = arith.truncf %66 : vector<24x8xf32> to vector<24x8xbf16>
    %68 = vector.extract_strided_slice %1 {offsets = [0, 80], sizes = [24, 8], strides = [1, 1]} : vector<24x96xf32> to vector<24x8xf32>
    %69 = arith.truncf %68 : vector<24x8xf32> to vector<24x8xbf16>
    %cst_19 = arith.constant dense<0.000000e+00> : vector<24x24xf32>
    %70 = tpu.matmul %65, %67, %cst_19 {dimension_numbers = #tpu.dot_dimension_numbers<[1], [1], [0], [0], [0, 0, 1, 0], [], []>} : vector<24x8xbf16>, vector<24x8xbf16>, vector<24x24xf32> -> vector<24x24xf32>
    %cst_20 = arith.constant 0.353553385 : f32
    %71 = vector.broadcast %cst_20 : f32 to vector<24x24xf32>
    %72 = arith.mulf %70, %71 : vector<24x24xf32>
    %73 = tpu.iota {dimensions = array<i32: 1>} : vector<24x24xi32>
    %c17_i32_21 = arith.constant 17 : i32
    %74 = vector.broadcast %c17_i32_21 : i32 to vector<24x24xi32>
    %75 = arith.cmpi slt, %73, %74 : vector<24x24xi32>
    %cst_22 = arith.constant -1.000000e+30 : f32
    %76 = vector.broadcast %cst_22 : f32 to vector<24x24xf32>
    %77 = arith.select %75, %72, %76 : vector<24x24xi1>, vector<24x24xf32>
    %cst_23 = arith.constant dense<0xFF800000> : vector<24xf32>
    %78 = vector.multi_reduction <maximumf>, %77, %cst_23 [1] : vector<24x24xf32> to vector<24xf32>
    %79 = vector.shape_cast %78 : vector<24xf32> to vector<24x1xf32>
    %80 = vector.broadcast %79 : vector<24x1xf32> to vector<24x24xf32>
    %81 = arith.subf %77, %80 : vector<24x24xf32>
    %82 = math.exp %81 : vector<24x24xf32>
    %cst_24 = arith.constant dense<0.000000e+00> : vector<24xf32>
    %83 = vector.multi_reduction <add>, %82, %cst_24 [1] : vector<24x24xf32> to vector<24xf32>
    %84 = vector.shape_cast %83 : vector<24xf32> to vector<24x1xf32>
    %85 = tpu.reciprocal %84 {approx = true} : vector<24x1xf32> -> vector<24x1xf32>
    %86 = vector.broadcast %85 : vector<24x1xf32> to vector<24x24xf32>
    %87 = arith.mulf %82, %86 : vector<24x24xf32>
    %88 = arith.truncf %87 : vector<24x24xf32> to vector<24x24xbf16>
    %cst_25 = arith.constant dense<0.000000e+00> : vector<24x8xf32>
    %89 = tpu.matmul %88, %69, %cst_25 {dimension_numbers = #tpu.dot_dimension_numbers<[1], [0], [0], [1], [0, 0, 1, 1], [], []>} : vector<24x24xbf16>, vector<24x8xbf16>, vector<24x8xf32> -> vector<24x8xf32>
    %90 = arith.truncf %89 : vector<24x8xf32> to vector<24x8xbf16>
    %91 = vector.extract_strided_slice %2 {offsets = [16, 0], sizes = [8, 32], strides = [1, 1]} : vector<32x32xbf16> to vector<8x32xbf16>
    %cst_26 = arith.constant dense<0.000000e+00> : vector<24x32xf32>
    %92 = tpu.matmul %90, %91, %cst_26 {dimension_numbers = #tpu.dot_dimension_numbers<[1], [0], [0], [1], [0, 0, 1, 1], [], []>} : vector<24x8xbf16>, vector<8x32xbf16>, vector<24x32xf32> -> vector<24x32xf32>
    %93 = arith.addf %63, %92 : vector<24x32xf32>
    %94 = vector.extract_strided_slice %1 {offsets = [0, 24], sizes = [24, 8], strides = [1, 1]} : vector<24x96xf32> to vector<24x8xf32>
    %95 = arith.truncf %94 : vector<24x8xf32> to vector<24x8xbf16>
    %96 = vector.extract_strided_slice %1 {offsets = [0, 56], sizes = [24, 8], strides = [1, 1]} : vector<24x96xf32> to vector<24x8xf32>
    %97 = arith.truncf %96 : vector<24x8xf32> to vector<24x8xbf16>
    %98 = vector.extract_strided_slice %1 {offsets = [0, 88], sizes = [24, 8], strides = [1, 1]} : vector<24x96xf32> to vector<24x8xf32>
    %99 = arith.truncf %98 : vector<24x8xf32> to vector<24x8xbf16>
    %cst_27 = arith.constant dense<0.000000e+00> : vector<24x24xf32>
    %100 = tpu.matmul %95, %97, %cst_27 {dimension_numbers = #tpu.dot_dimension_numbers<[1], [1], [0], [0], [0, 0, 1, 0], [], []>} : vector<24x8xbf16>, vector<24x8xbf16>, vector<24x24xf32> -> vector<24x24xf32>
    %cst_28 = arith.constant 0.353553385 : f32
    %101 = vector.broadcast %cst_28 : f32 to vector<24x24xf32>
    %102 = arith.mulf %100, %101 : vector<24x24xf32>
    %103 = tpu.iota {dimensions = array<i32: 1>} : vector<24x24xi32>
    %c17_i32_29 = arith.constant 17 : i32
    %104 = vector.broadcast %c17_i32_29 : i32 to vector<24x24xi32>
    %105 = arith.cmpi slt, %103, %104 : vector<24x24xi32>
    %cst_30 = arith.constant -1.000000e+30 : f32
    %106 = vector.broadcast %cst_30 : f32 to vector<24x24xf32>
    %107 = arith.select %105, %102, %106 : vector<24x24xi1>, vector<24x24xf32>
    %cst_31 = arith.constant dense<0xFF800000> : vector<24xf32>
    %108 = vector.multi_reduction <maximumf>, %107, %cst_31 [1] : vector<24x24xf32> to vector<24xf32>
    %109 = vector.shape_cast %108 : vector<24xf32> to vector<24x1xf32>
    %110 = vector.broadcast %109 : vector<24x1xf32> to vector<24x24xf32>
    %111 = arith.subf %107, %110 : vector<24x24xf32>
    %112 = math.exp %111 : vector<24x24xf32>
    %cst_32 = arith.constant dense<0.000000e+00> : vector<24xf32>
    %113 = vector.multi_reduction <add>, %112, %cst_32 [1] : vector<24x24xf32> to vector<24xf32>
    %114 = vector.shape_cast %113 : vector<24xf32> to vector<24x1xf32>
    %115 = tpu.reciprocal %114 {approx = true} : vector<24x1xf32> -> vector<24x1xf32>
    %116 = vector.broadcast %115 : vector<24x1xf32> to vector<24x24xf32>
    %117 = arith.mulf %112, %116 : vector<24x24xf32>
    %118 = arith.truncf %117 : vector<24x24xf32> to vector<24x24xbf16>
    %cst_33 = arith.constant dense<0.000000e+00> : vector<24x8xf32>
    %119 = tpu.matmul %118, %99, %cst_33 {dimension_numbers = #tpu.dot_dimension_numbers<[1], [0], [0], [1], [0, 0, 1, 1], [], []>} : vector<24x24xbf16>, vector<24x8xbf16>, vector<24x8xf32> -> vector<24x8xf32>
    %120 = arith.truncf %119 : vector<24x8xf32> to vector<24x8xbf16>
    %121 = vector.extract_strided_slice %2 {offsets = [24, 0], sizes = [8, 32], strides = [1, 1]} : vector<32x32xbf16> to vector<8x32xbf16>
    %cst_34 = arith.constant dense<0.000000e+00> : vector<24x32xf32>
    %122 = tpu.matmul %120, %121, %cst_34 {dimension_numbers = #tpu.dot_dimension_numbers<[1], [0], [0], [1], [0, 0, 1, 1], [], []>} : vector<24x8xbf16>, vector<8x32xbf16>, vector<24x32xf32> -> vector<24x32xf32>
    %123 = arith.addf %93, %122 : vector<24x32xf32>
    %c0_35 = arith.constant 0 : index
    %c0_36 = arith.constant 0 : index
    %124 = vector.load %arg4[%c0_35, %c0_36] : memref<1x32xf32, #tpu.memory_space<vmem>>, vector<1x32xf32>
    %125 = vector.broadcast %124 : vector<1x32xf32> to vector<24x32xf32>
    %126 = arith.addf %123, %125 : vector<24x32xf32>
    %c0_37 = arith.constant 0 : index
    %c0_38 = arith.constant 0 : index
    %c0_39 = arith.constant 0 : index
    %127 = vector.load %arg2[%c0_37, %c0_38, %c0_39] : memref<1x24x32xf32, #tpu.memory_space<vmem>>, vector<1x24x32xf32>
    %128 = vector.shape_cast %127 : vector<1x24x32xf32> to vector<24x32xf32>
    %c0_40 = arith.constant 0 : index
    %c0_41 = arith.constant 0 : index
    %129 = vector.load %arg5[%c0_40, %c0_41] : memref<1x32xf32, #tpu.memory_space<vmem>>, vector<1x32xf32>
    %130 = vector.broadcast %129 : vector<1x32xf32> to vector<24x32xf32>
    %131 = arith.mulf %130, %126 : vector<24x32xf32>
    %132 = arith.addf %128, %131 : vector<24x32xf32>
    %c0_42 = arith.constant 0 : index
    %c0_43 = arith.constant 0 : index
    %c0_44 = arith.constant 0 : index
    %133 = vector.load %arg6[%c0_42, %c0_43, %c0_44] : memref<1x24x32xf32, #tpu.memory_space<vmem>>, vector<1x24x32xf32>
    %134 = vector.shape_cast %133 : vector<1x24x32xf32> to vector<24x32xf32>
    %135 = vector.shape_cast %132 : vector<24x32xf32> to vector<1x24x32xf32>
    tpu.vector_store %arg6[%c0_42, %c0_43, %c0_44], %135 {strides = array<i32>} : memref<1x24x32xf32, #tpu.memory_space<vmem>>, vector<1x24x32xf32>,
    return
  }
  func.func @transform_0(%arg0: i32) -> (i32, i32, i32) {
    %c0_i32 = arith.constant 0 : i32
    %c0_i32_0 = arith.constant 0 : i32
    %c0_i32_1 = arith.constant 0 : i32
    return %arg0, %c0_i32, %c0_i32_0 : i32, i32, i32
  }
  func.func @transform_1(%arg0: i32) -> (i32, i32, i32) {
    %c0_i32 = arith.constant 0 : i32
    %c0_i32_0 = arith.constant 0 : i32
    %c0_i32_1 = arith.constant 0 : i32
    return %arg0, %c0_i32, %c0_i32_0 : i32, i32, i32
  }
  func.func @transform_2(%arg0: i32) -> (i32, i32) {
    %c0_i32 = arith.constant 0 : i32
    %c0_i32_0 = arith.constant 0 : i32
    %c0_i32_1 = arith.constant 0 : i32
    return %c0_i32, %c0_i32_0 : i32, i32
  }
  func.func @transform_3(%arg0: i32) -> (i32, i32) {
    %c0_i32 = arith.constant 0 : i32
    %c0_i32_0 = arith.constant 0 : i32
    %c0_i32_1 = arith.constant 0 : i32
    return %c0_i32, %c0_i32_0 : i32, i32
  }
  func.func @transform_4(%arg0: i32) -> (i32, i32) {
    %c0_i32 = arith.constant 0 : i32
    %c0_i32_0 = arith.constant 0 : i32
    %c0_i32_1 = arith.constant 0 : i32
    return %c0_i32, %c0_i32_0 : i32, i32
  }
  func.func @transform_5(%arg0: i32) -> (i32, i32, i32) {
    %c0_i32 = arith.constant 0 : i32
    %c0_i32_0 = arith.constant 0 : i32
    %c0_i32_1 = arith.constant 0 : i32
    return %arg0, %c0_i32, %c0_i32_0 : i32, i32, i32
  }
}

module attributes {stable_mosaic.version = 11 : i64} {
  func.func @_linear_kernel(%arg0: i32, %arg1: memref<32x48xf32, #tpu.memory_space<vmem>>, %arg2: memref<48x32xbf16, #tpu.memory_space<vmem>>, %arg3: memref<1x32xf32, #tpu.memory_space<vmem>>, %arg4: memref<32x32xf32, #tpu.memory_space<vmem>>) attributes {dimension_semantics = [#tpu.dimension_semantics<parallel>], iteration_bounds = array<i64: 1>, scalar_prefetch = 0 : i64, scratch_operands = 0 : i64, tpu.core_type = #tpu.core_type<tc>, window_params = [{transform_indices = @transform_0, window_bounds = array<i64: 32, 48>}, {pipeline_mode = #tpu.pipeline_mode<synchronous>, transform_indices = @transform_1, window_bounds = array<i64: 48, 32>}, {pipeline_mode = #tpu.pipeline_mode<synchronous>, transform_indices = @transform_2, window_bounds = array<i64: 1, 32>}, {transform_indices = @transform_3, window_bounds = array<i64: 32, 32>}]} {
    %c0 = arith.constant 0 : index
    %c0_0 = arith.constant 0 : index
    %0 = vector.load %arg1[%c0, %c0_0] : memref<32x48xf32, #tpu.memory_space<vmem>>, vector<32x48xf32>
    %1 = arith.truncf %0 : vector<32x48xf32> to vector<32x48xbf16>
    %c0_1 = arith.constant 0 : index
    %c0_2 = arith.constant 0 : index
    %2 = vector.load %arg2[%c0_1, %c0_2] : memref<48x32xbf16, #tpu.memory_space<vmem>>, vector<48x32xbf16>
    %cst = arith.constant dense<0.000000e+00> : vector<32x32xf32>
    %3 = tpu.matmul %1, %2, %cst {dimension_numbers = #tpu.dot_dimension_numbers<[1], [0], [0], [1], [0, 0, 1, 1], [], []>} : vector<32x48xbf16>, vector<48x32xbf16>, vector<32x32xf32> -> vector<32x32xf32>
    %c0_3 = arith.constant 0 : index
    %c0_4 = arith.constant 0 : index
    %4 = vector.load %arg3[%c0_3, %c0_4] : memref<1x32xf32, #tpu.memory_space<vmem>>, vector<1x32xf32>
    %5 = vector.broadcast %4 : vector<1x32xf32> to vector<32x32xf32>
    %6 = arith.addf %3, %5 : vector<32x32xf32>
    %c0_5 = arith.constant 0 : index
    %c0_6 = arith.constant 0 : index
    %7 = vector.load %arg4[%c0_5, %c0_6] : memref<32x32xf32, #tpu.memory_space<vmem>>, vector<32x32xf32>
    tpu.vector_store %arg4[%c0_5, %c0_6], %6 {strides = array<i32>} : memref<32x32xf32, #tpu.memory_space<vmem>>, vector<32x32xf32>,
    return
  }
  func.func @transform_0(%arg0: i32) -> (i32, i32) {
    %c0_i32 = arith.constant 0 : i32
    %c0_i32_0 = arith.constant 0 : i32
    return %arg0, %c0_i32 : i32, i32
  }
  func.func @transform_1(%arg0: i32) -> (i32, i32) {
    %c0_i32 = arith.constant 0 : i32
    %c0_i32_0 = arith.constant 0 : i32
    %c0_i32_1 = arith.constant 0 : i32
    return %c0_i32, %c0_i32_0 : i32, i32
  }
  func.func @transform_2(%arg0: i32) -> (i32, i32) {
    %c0_i32 = arith.constant 0 : i32
    %c0_i32_0 = arith.constant 0 : i32
    %c0_i32_1 = arith.constant 0 : i32
    return %c0_i32, %c0_i32_0 : i32, i32
  }
  func.func @transform_3(%arg0: i32) -> (i32, i32) {
    %c0_i32 = arith.constant 0 : i32
    %c0_i32_0 = arith.constant 0 : i32
    return %arg0, %c0_i32 : i32, i32
  }
}

module attributes {stable_mosaic.version = 11 : i64} {
  func.func @_ln_linear_kernel(%arg0: i32, %arg1: memref<48x32xf32, #tpu.memory_space<vmem>>, %arg2: memref<1x32xf32, #tpu.memory_space<vmem>>, %arg3: memref<1x32xf32, #tpu.memory_space<vmem>>, %arg4: memref<32x96xbf16, #tpu.memory_space<vmem>>, %arg5: memref<1x96xf32, #tpu.memory_space<vmem>>, %arg6: memref<48x96xf32, #tpu.memory_space<vmem>>) attributes {dimension_semantics = [#tpu.dimension_semantics<parallel>], iteration_bounds = array<i64: 1>, scalar_prefetch = 0 : i64, scratch_operands = 0 : i64, tpu.core_type = #tpu.core_type<tc>, window_params = [{transform_indices = @transform_0, window_bounds = array<i64: 48, 32>}, {pipeline_mode = #tpu.pipeline_mode<synchronous>, transform_indices = @transform_1, window_bounds = array<i64: 1, 32>}, {pipeline_mode = #tpu.pipeline_mode<synchronous>, transform_indices = @transform_2, window_bounds = array<i64: 1, 32>}, {pipeline_mode = #tpu.pipeline_mode<synchronous>, transform_indices = @transform_3, window_bounds = array<i64: 32, 96>}, {pipeline_mode = #tpu.pipeline_mode<synchronous>, transform_indices = @transform_4, window_bounds = array<i64: 1, 96>}, {transform_indices = @transform_5, window_bounds = array<i64: 48, 96>}]} {
    %c0 = arith.constant 0 : index
    %c0_0 = arith.constant 0 : index
    %0 = vector.load %arg1[%c0, %c0_0] : memref<48x32xf32, #tpu.memory_space<vmem>>, vector<48x32xf32>
    %cst = arith.constant dense<0.000000e+00> : vector<48xf32>
    %1 = vector.multi_reduction <add>, %0, %cst [1] : vector<48x32xf32> to vector<48xf32>
    %2 = vector.shape_cast %1 : vector<48xf32> to vector<48x1xf32>
    %cst_1 = arith.constant 3.200000e+01 : f32
    %3 = vector.broadcast %cst_1 : f32 to vector<48x1xf32>
    %4 = arith.divf %2, %3 : vector<48x1xf32>
    %5 = vector.broadcast %4 : vector<48x1xf32> to vector<48x32xf32>
    %6 = arith.subf %0, %5 : vector<48x32xf32>
    %7 = vector.broadcast %4 : vector<48x1xf32> to vector<48x32xf32>
    %8 = arith.subf %0, %7 : vector<48x32xf32>
    %9 = arith.mulf %6, %8 : vector<48x32xf32>
    %cst_2 = arith.constant dense<0.000000e+00> : vector<48xf32>
    %10 = vector.multi_reduction <add>, %9, %cst_2 [1] : vector<48x32xf32> to vector<48xf32>
    %11 = vector.shape_cast %10 : vector<48xf32> to vector<48x1xf32>
    %cst_3 = arith.constant 3.200000e+01 : f32
    %12 = vector.broadcast %cst_3 : f32 to vector<48x1xf32>
    %13 = arith.divf %11, %12 : vector<48x1xf32>
    %14 = vector.broadcast %4 : vector<48x1xf32> to vector<48x32xf32>
    %15 = arith.subf %0, %14 : vector<48x32xf32>
    %cst_4 = arith.constant 9.99999996E-13 : f32
    %16 = vector.broadcast %cst_4 : f32 to vector<48x1xf32>
    %17 = arith.addf %13, %16 : vector<48x1xf32>
    %18 = math.rsqrt %17 : vector<48x1xf32>
    %19 = vector.broadcast %18 : vector<48x1xf32> to vector<48x32xf32>
    %20 = arith.mulf %15, %19 : vector<48x32xf32>
    %c0_5 = arith.constant 0 : index
    %c0_6 = arith.constant 0 : index
    %21 = vector.load %arg2[%c0_5, %c0_6] : memref<1x32xf32, #tpu.memory_space<vmem>>, vector<1x32xf32>
    %22 = vector.broadcast %21 : vector<1x32xf32> to vector<48x32xf32>
    %23 = arith.mulf %20, %22 : vector<48x32xf32>
    %c0_7 = arith.constant 0 : index
    %c0_8 = arith.constant 0 : index
    %24 = vector.load %arg3[%c0_7, %c0_8] : memref<1x32xf32, #tpu.memory_space<vmem>>, vector<1x32xf32>
    %25 = vector.broadcast %24 : vector<1x32xf32> to vector<48x32xf32>
    %26 = arith.addf %23, %25 : vector<48x32xf32>
    %27 = arith.truncf %26 : vector<48x32xf32> to vector<48x32xbf16>
    %c0_9 = arith.constant 0 : index
    %c0_10 = arith.constant 0 : index
    %28 = vector.load %arg4[%c0_9, %c0_10] : memref<32x96xbf16, #tpu.memory_space<vmem>>, vector<32x96xbf16>
    %cst_11 = arith.constant dense<0.000000e+00> : vector<48x96xf32>
    %29 = tpu.matmul %27, %28, %cst_11 {dimension_numbers = #tpu.dot_dimension_numbers<[1], [0], [0], [1], [0, 0, 1, 1], [], []>} : vector<48x32xbf16>, vector<32x96xbf16>, vector<48x96xf32> -> vector<48x96xf32>
    %c0_12 = arith.constant 0 : index
    %c0_13 = arith.constant 0 : index
    %30 = vector.load %arg5[%c0_12, %c0_13] : memref<1x96xf32, #tpu.memory_space<vmem>>, vector<1x96xf32>
    %31 = vector.broadcast %30 : vector<1x96xf32> to vector<48x96xf32>
    %32 = arith.addf %29, %31 : vector<48x96xf32>
    %c0_14 = arith.constant 0 : index
    %c0_15 = arith.constant 0 : index
    %33 = vector.load %arg6[%c0_14, %c0_15] : memref<48x96xf32, #tpu.memory_space<vmem>>, vector<48x96xf32>
    tpu.vector_store %arg6[%c0_14, %c0_15], %32 {strides = array<i32>} : memref<48x96xf32, #tpu.memory_space<vmem>>, vector<48x96xf32>,
    return
  }
  func.func @transform_0(%arg0: i32) -> (i32, i32) {
    %c0_i32 = arith.constant 0 : i32
    %c0_i32_0 = arith.constant 0 : i32
    return %arg0, %c0_i32 : i32, i32
  }
  func.func @transform_1(%arg0: i32) -> (i32, i32) {
    %c0_i32 = arith.constant 0 : i32
    %c0_i32_0 = arith.constant 0 : i32
    %c0_i32_1 = arith.constant 0 : i32
    return %c0_i32, %c0_i32_0 : i32, i32
  }
  func.func @transform_2(%arg0: i32) -> (i32, i32) {
    %c0_i32 = arith.constant 0 : i32
    %c0_i32_0 = arith.constant 0 : i32
    %c0_i32_1 = arith.constant 0 : i32
    return %c0_i32, %c0_i32_0 : i32, i32
  }
  func.func @transform_3(%arg0: i32) -> (i32, i32) {
    %c0_i32 = arith.constant 0 : i32
    %c0_i32_0 = arith.constant 0 : i32
    %c0_i32_1 = arith.constant 0 : i32
    return %c0_i32, %c0_i32_0 : i32, i32
  }
  func.func @transform_4(%arg0: i32) -> (i32, i32) {
    %c0_i32 = arith.constant 0 : i32
    %c0_i32_0 = arith.constant 0 : i32
    %c0_i32_1 = arith.constant 0 : i32
    return %c0_i32, %c0_i32_0 : i32, i32
  }
  func.func @transform_5(%arg0: i32) -> (i32, i32) {
    %c0_i32 = arith.constant 0 : i32
    %c0_i32_0 = arith.constant 0 : i32
    return %arg0, %c0_i32 : i32, i32
  }
}

module attributes {stable_mosaic.version = 11 : i64} {
  func.func @_ln_mlp_res_kernel(%arg0: i32, %arg1: memref<48x32xf32, #tpu.memory_space<vmem>>, %arg2: memref<1x32xf32, #tpu.memory_space<vmem>>, %arg3: memref<1x32xf32, #tpu.memory_space<vmem>>, %arg4: memref<32x64xbf16, #tpu.memory_space<vmem>>, %arg5: memref<1x64xf32, #tpu.memory_space<vmem>>, %arg6: memref<64x32xbf16, #tpu.memory_space<vmem>>, %arg7: memref<1x32xf32, #tpu.memory_space<vmem>>, %arg8: memref<1x32xf32, #tpu.memory_space<vmem>>, %arg9: memref<48x32xf32, #tpu.memory_space<vmem>>) attributes {dimension_semantics = [#tpu.dimension_semantics<parallel>], iteration_bounds = array<i64: 1>, scalar_prefetch = 0 : i64, scratch_operands = 0 : i64, tpu.core_type = #tpu.core_type<tc>, window_params = [{transform_indices = @transform_0, window_bounds = array<i64: 48, 32>}, {pipeline_mode = #tpu.pipeline_mode<synchronous>, transform_indices = @transform_1, window_bounds = array<i64: 1, 32>}, {pipeline_mode = #tpu.pipeline_mode<synchronous>, transform_indices = @transform_2, window_bounds = array<i64: 1, 32>}, {pipeline_mode = #tpu.pipeline_mode<synchronous>, transform_indices = @transform_3, window_bounds = array<i64: 32, 64>}, {pipeline_mode = #tpu.pipeline_mode<synchronous>, transform_indices = @transform_4, window_bounds = array<i64: 1, 64>}, {pipeline_mode = #tpu.pipeline_mode<synchronous>, transform_indices = @transform_5, window_bounds = array<i64: 64, 32>}, {pipeline_mode = #tpu.pipeline_mode<synchronous>, transform_indices = @transform_6, window_bounds = array<i64: 1, 32>}, {pipeline_mode = #tpu.pipeline_mode<synchronous>, transform_indices = @transform_7, window_bounds = array<i64: 1, 32>}, {transform_indices = @transform_8, window_bounds = array<i64: 48, 32>}]} {
    %c0 = arith.constant 0 : index
    %c0_0 = arith.constant 0 : index
    %0 = vector.load %arg1[%c0, %c0_0] : memref<48x32xf32, #tpu.memory_space<vmem>>, vector<48x32xf32>
    %cst = arith.constant dense<0.000000e+00> : vector<48xf32>
    %1 = vector.multi_reduction <add>, %0, %cst [1] : vector<48x32xf32> to vector<48xf32>
    %2 = vector.shape_cast %1 : vector<48xf32> to vector<48x1xf32>
    %cst_1 = arith.constant 3.200000e+01 : f32
    %3 = vector.broadcast %cst_1 : f32 to vector<48x1xf32>
    %4 = arith.divf %2, %3 : vector<48x1xf32>
    %5 = vector.broadcast %4 : vector<48x1xf32> to vector<48x32xf32>
    %6 = arith.subf %0, %5 : vector<48x32xf32>
    %7 = vector.broadcast %4 : vector<48x1xf32> to vector<48x32xf32>
    %8 = arith.subf %0, %7 : vector<48x32xf32>
    %9 = arith.mulf %6, %8 : vector<48x32xf32>
    %cst_2 = arith.constant dense<0.000000e+00> : vector<48xf32>
    %10 = vector.multi_reduction <add>, %9, %cst_2 [1] : vector<48x32xf32> to vector<48xf32>
    %11 = vector.shape_cast %10 : vector<48xf32> to vector<48x1xf32>
    %cst_3 = arith.constant 3.200000e+01 : f32
    %12 = vector.broadcast %cst_3 : f32 to vector<48x1xf32>
    %13 = arith.divf %11, %12 : vector<48x1xf32>
    %14 = vector.broadcast %4 : vector<48x1xf32> to vector<48x32xf32>
    %15 = arith.subf %0, %14 : vector<48x32xf32>
    %cst_4 = arith.constant 9.99999996E-13 : f32
    %16 = vector.broadcast %cst_4 : f32 to vector<48x1xf32>
    %17 = arith.addf %13, %16 : vector<48x1xf32>
    %18 = math.rsqrt %17 : vector<48x1xf32>
    %19 = vector.broadcast %18 : vector<48x1xf32> to vector<48x32xf32>
    %20 = arith.mulf %15, %19 : vector<48x32xf32>
    %c0_5 = arith.constant 0 : index
    %c0_6 = arith.constant 0 : index
    %21 = vector.load %arg2[%c0_5, %c0_6] : memref<1x32xf32, #tpu.memory_space<vmem>>, vector<1x32xf32>
    %22 = vector.broadcast %21 : vector<1x32xf32> to vector<48x32xf32>
    %23 = arith.mulf %20, %22 : vector<48x32xf32>
    %c0_7 = arith.constant 0 : index
    %c0_8 = arith.constant 0 : index
    %24 = vector.load %arg3[%c0_7, %c0_8] : memref<1x32xf32, #tpu.memory_space<vmem>>, vector<1x32xf32>
    %25 = vector.broadcast %24 : vector<1x32xf32> to vector<48x32xf32>
    %26 = arith.addf %23, %25 : vector<48x32xf32>
    %27 = arith.truncf %26 : vector<48x32xf32> to vector<48x32xbf16>
    %c0_9 = arith.constant 0 : index
    %c0_10 = arith.constant 0 : index
    %28 = vector.load %arg4[%c0_9, %c0_10] : memref<32x64xbf16, #tpu.memory_space<vmem>>, vector<32x64xbf16>
    %cst_11 = arith.constant dense<0.000000e+00> : vector<48x64xf32>
    %29 = tpu.matmul %27, %28, %cst_11 {dimension_numbers = #tpu.dot_dimension_numbers<[1], [0], [0], [1], [0, 0, 1, 1], [], []>} : vector<48x32xbf16>, vector<32x64xbf16>, vector<48x64xf32> -> vector<48x64xf32>
    %c0_12 = arith.constant 0 : index
    %c0_13 = arith.constant 0 : index
    %30 = vector.load %arg5[%c0_12, %c0_13] : memref<1x64xf32, #tpu.memory_space<vmem>>, vector<1x64xf32>
    %31 = vector.broadcast %30 : vector<1x64xf32> to vector<48x64xf32>
    %32 = arith.addf %29, %31 : vector<48x64xf32>
    %cst_14 = arith.constant 5.000000e-01 : f32
    %33 = vector.broadcast %cst_14 : f32 to vector<48x64xf32>
    %34 = arith.mulf %33, %32 : vector<48x64xf32>
    %cst_15 = arith.constant 4.471500e-02 : f32
    %35 = vector.broadcast %cst_15 : f32 to vector<48x64xf32>
    %36 = arith.mulf %35, %32 : vector<48x64xf32>
    %37 = arith.mulf %36, %32 : vector<48x64xf32>
    %38 = arith.mulf %37, %32 : vector<48x64xf32>
    %39 = arith.addf %32, %38 : vector<48x64xf32>
    %cst_16 = arith.constant 0.797884583 : f32
    %40 = vector.broadcast %cst_16 : f32 to vector<48x64xf32>
    %41 = arith.mulf %40, %39 : vector<48x64xf32>
    %42 = math.tanh %41 : vector<48x64xf32>
    %cst_17 = arith.constant 1.000000e+00 : f32
    %43 = vector.broadcast %cst_17 : f32 to vector<48x64xf32>
    %44 = arith.addf %43, %42 : vector<48x64xf32>
    %45 = arith.mulf %34, %44 : vector<48x64xf32>
    %46 = arith.truncf %45 : vector<48x64xf32> to vector<48x64xbf16>
    %c0_18 = arith.constant 0 : index
    %c0_19 = arith.constant 0 : index
    %47 = vector.load %arg6[%c0_18, %c0_19] : memref<64x32xbf16, #tpu.memory_space<vmem>>, vector<64x32xbf16>
    %cst_20 = arith.constant dense<0.000000e+00> : vector<48x32xf32>
    %48 = tpu.matmul %46, %47, %cst_20 {dimension_numbers = #tpu.dot_dimension_numbers<[1], [0], [0], [1], [0, 0, 1, 1], [], []>} : vector<48x64xbf16>, vector<64x32xbf16>, vector<48x32xf32> -> vector<48x32xf32>
    %c0_21 = arith.constant 0 : index
    %c0_22 = arith.constant 0 : index
    %49 = vector.load %arg7[%c0_21, %c0_22] : memref<1x32xf32, #tpu.memory_space<vmem>>, vector<1x32xf32>
    %50 = vector.broadcast %49 : vector<1x32xf32> to vector<48x32xf32>
    %51 = arith.addf %48, %50 : vector<48x32xf32>
    %c0_23 = arith.constant 0 : index
    %c0_24 = arith.constant 0 : index
    %52 = vector.load %arg8[%c0_23, %c0_24] : memref<1x32xf32, #tpu.memory_space<vmem>>, vector<1x32xf32>
    %53 = vector.broadcast %52 : vector<1x32xf32> to vector<48x32xf32>
    %54 = arith.mulf %53, %51 : vector<48x32xf32>
    %55 = arith.addf %0, %54 : vector<48x32xf32>
    %c0_25 = arith.constant 0 : index
    %c0_26 = arith.constant 0 : index
    %56 = vector.load %arg9[%c0_25, %c0_26] : memref<48x32xf32, #tpu.memory_space<vmem>>, vector<48x32xf32>
    tpu.vector_store %arg9[%c0_25, %c0_26], %55 {strides = array<i32>} : memref<48x32xf32, #tpu.memory_space<vmem>>, vector<48x32xf32>,
    return
  }
  func.func @transform_0(%arg0: i32) -> (i32, i32) {
    %c0_i32 = arith.constant 0 : i32
    %c0_i32_0 = arith.constant 0 : i32
    return %arg0, %c0_i32 : i32, i32
  }
  func.func @transform_1(%arg0: i32) -> (i32, i32) {
    %c0_i32 = arith.constant 0 : i32
    %c0_i32_0 = arith.constant 0 : i32
    %c0_i32_1 = arith.constant 0 : i32
    return %c0_i32, %c0_i32_0 : i32, i32
  }
  func.func @transform_2(%arg0: i32) -> (i32, i32) {
    %c0_i32 = arith.constant 0 : i32
    %c0_i32_0 = arith.constant 0 : i32
    %c0_i32_1 = arith.constant 0 : i32
    return %c0_i32, %c0_i32_0 : i32, i32
  }
  func.func @transform_3(%arg0: i32) -> (i32, i32) {
    %c0_i32 = arith.constant 0 : i32
    %c0_i32_0 = arith.constant 0 : i32
    %c0_i32_1 = arith.constant 0 : i32
    return %c0_i32, %c0_i32_0 : i32, i32
  }
  func.func @transform_4(%arg0: i32) -> (i32, i32) {
    %c0_i32 = arith.constant 0 : i32
    %c0_i32_0 = arith.constant 0 : i32
    %c0_i32_1 = arith.constant 0 : i32
    return %c0_i32, %c0_i32_0 : i32, i32
  }
  func.func @transform_5(%arg0: i32) -> (i32, i32) {
    %c0_i32 = arith.constant 0 : i32
    %c0_i32_0 = arith.constant 0 : i32
    %c0_i32_1 = arith.constant 0 : i32
    return %c0_i32, %c0_i32_0 : i32, i32
  }
  func.func @transform_6(%arg0: i32) -> (i32, i32) {
    %c0_i32 = arith.constant 0 : i32
    %c0_i32_0 = arith.constant 0 : i32
    %c0_i32_1 = arith.constant 0 : i32
    return %c0_i32, %c0_i32_0 : i32, i32
  }
  func.func @transform_7(%arg0: i32) -> (i32, i32) {
    %c0_i32 = arith.constant 0 : i32
    %c0_i32_0 = arith.constant 0 : i32
    %c0_i32_1 = arith.constant 0 : i32
    return %c0_i32, %c0_i32_0 : i32, i32
  }
  func.func @transform_8(%arg0: i32) -> (i32, i32) {
    %c0_i32 = arith.constant 0 : i32
    %c0_i32_0 = arith.constant 0 : i32
    return %arg0, %c0_i32 : i32, i32
  }
}

module attributes {stable_mosaic.version = 11 : i64} {
  func.func @_pool_head_kernel(%arg0: memref<2x24x32xf32, #tpu.memory_space<vmem>>, %arg1: memref<1x32xf32, #tpu.memory_space<vmem>>, %arg2: memref<1x32xf32, #tpu.memory_space<vmem>>, %arg3: memref<32x128xbf16, #tpu.memory_space<vmem>>, %arg4: memref<1x128xf32, #tpu.memory_space<vmem>>, %arg5: memref<2x128xf32, #tpu.memory_space<vmem>>) attributes {dimension_semantics = [], scalar_prefetch = 0 : i64, scratch_operands = 0 : i64, tpu.core_type = #tpu.core_type<tc>} {
    %c0 = arith.constant 0 : index
    %c0_0 = arith.constant 0 : index
    %c0_1 = arith.constant 0 : index
    %0 = vector.load %arg0[%c0, %c0_0, %c0_1] : memref<2x24x32xf32, #tpu.memory_space<vmem>>, vector<2x24x32xf32>
    %1 = tpu.iota {dimensions = array<i32: 1>} : vector<2x24x32xi32>
    %c1_i32 = arith.constant 1 : i32
    %2 = vector.broadcast %c1_i32 : i32 to vector<2x24x32xi32>
    %3 = arith.cmpi sge, %1, %2 : vector<2x24x32xi32>
    %c16_i32 = arith.constant 16 : i32
    %4 = vector.broadcast %c16_i32 : i32 to vector<2x24x32xi32>
    %5 = arith.cmpi sle, %1, %4 : vector<2x24x32xi32>
    %6 = arith.andi %3, %5 : vector<2x24x32xi1>
    %7 = arith.extui %6 : vector<2x24x32xi1> to vector<2x24x32xi32>
    %8 = arith.sitofp %7 : vector<2x24x32xi32> to vector<2x24x32xf32>
    %9 = arith.mulf %0, %8 : vector<2x24x32xf32>
    %cst = arith.constant dense<0.000000e+00> : vector<2x32xf32>
    %10 = vector.multi_reduction <add>, %9, %cst [1] : vector<2x24x32xf32> to vector<2x32xf32>
    %cst_2 = arith.constant 6.250000e-02 : f32
    %11 = vector.broadcast %cst_2 : f32 to vector<2x32xf32>
    %12 = arith.mulf %10, %11 : vector<2x32xf32>
    %cst_3 = arith.constant dense<0.000000e+00> : vector<2xf32>
    %13 = vector.multi_reduction <add>, %12, %cst_3 [1] : vector<2x32xf32> to vector<2xf32>
    %14 = vector.shape_cast %13 : vector<2xf32> to vector<2x1xf32>
    %cst_4 = arith.constant 3.200000e+01 : f32
    %15 = vector.broadcast %cst_4 : f32 to vector<2x1xf32>
    %16 = arith.divf %14, %15 : vector<2x1xf32>
    %17 = vector.broadcast %16 : vector<2x1xf32> to vector<2x32xf32>
    %18 = arith.subf %12, %17 : vector<2x32xf32>
    %19 = vector.broadcast %16 : vector<2x1xf32> to vector<2x32xf32>
    %20 = arith.subf %12, %19 : vector<2x32xf32>
    %21 = arith.mulf %18, %20 : vector<2x32xf32>
    %cst_5 = arith.constant dense<0.000000e+00> : vector<2xf32>
    %22 = vector.multi_reduction <add>, %21, %cst_5 [1] : vector<2x32xf32> to vector<2xf32>
    %23 = vector.shape_cast %22 : vector<2xf32> to vector<2x1xf32>
    %cst_6 = arith.constant 3.200000e+01 : f32
    %24 = vector.broadcast %cst_6 : f32 to vector<2x1xf32>
    %25 = arith.divf %23, %24 : vector<2x1xf32>
    %26 = vector.broadcast %16 : vector<2x1xf32> to vector<2x32xf32>
    %27 = arith.subf %12, %26 : vector<2x32xf32>
    %cst_7 = arith.constant 9.99999996E-13 : f32
    %28 = vector.broadcast %cst_7 : f32 to vector<2x1xf32>
    %29 = arith.addf %25, %28 : vector<2x1xf32>
    %30 = math.rsqrt %29 : vector<2x1xf32>
    %31 = vector.broadcast %30 : vector<2x1xf32> to vector<2x32xf32>
    %32 = arith.mulf %27, %31 : vector<2x32xf32>
    %c0_8 = arith.constant 0 : index
    %c0_9 = arith.constant 0 : index
    %33 = vector.load %arg1[%c0_8, %c0_9] : memref<1x32xf32, #tpu.memory_space<vmem>>, vector<1x32xf32>
    %34 = vector.broadcast %33 : vector<1x32xf32> to vector<2x32xf32>
    %35 = arith.mulf %32, %34 : vector<2x32xf32>
    %c0_10 = arith.constant 0 : index
    %c0_11 = arith.constant 0 : index
    %36 = vector.load %arg2[%c0_10, %c0_11] : memref<1x32xf32, #tpu.memory_space<vmem>>, vector<1x32xf32>
    %37 = vector.broadcast %36 : vector<1x32xf32> to vector<2x32xf32>
    %38 = arith.addf %35, %37 : vector<2x32xf32>
    %39 = arith.truncf %38 : vector<2x32xf32> to vector<2x32xbf16>
    %c0_12 = arith.constant 0 : index
    %c0_13 = arith.constant 0 : index
    %40 = vector.load %arg3[%c0_12, %c0_13] : memref<32x128xbf16, #tpu.memory_space<vmem>>, vector<32x128xbf16>
    %cst_14 = arith.constant dense<0.000000e+00> : vector<2x128xf32>
    %41 = tpu.matmul %39, %40, %cst_14 {dimension_numbers = #tpu.dot_dimension_numbers<[1], [0], [0], [1], [0, 0, 1, 1], [], []>} : vector<2x32xbf16>, vector<32x128xbf16>, vector<2x128xf32> -> vector<2x128xf32>
    %c0_15 = arith.constant 0 : index
    %c0_16 = arith.constant 0 : index
    %42 = vector.load %arg4[%c0_15, %c0_16] : memref<1x128xf32, #tpu.memory_space<vmem>>, vector<1x128xf32>
    %43 = vector.broadcast %42 : vector<1x128xf32> to vector<2x128xf32>
    %44 = arith.addf %41, %43 : vector<2x128xf32>
    %c0_17 = arith.constant 0 : index
    %c0_18 = arith.constant 0 : index
    %45 = vector.load %arg5[%c0_17, %c0_18] : memref<2x128xf32, #tpu.memory_space<vmem>>, vector<2x128xf32>
    tpu.vector_store %arg5[%c0_17, %c0_18], %44 {strides = array<i32>} : memref<2x128xf32, #tpu.memory_space<vmem>>, vector<2x128xf32>,
    return
  }
}

</mosaic_0001>

<llo_original>
// kernel: beit_forward.8
$region0: #{beit_forward.8}
  #allocation0 [shape = 'u32[]', space=smem, size = 0x4, offset = 0x4, fixed_abs, tag = 'smem constant byte address 0x4 - core index']
  #allocation1 [shape = 'u32[72,128]{1,0:T(1,128)}', space=vmem, size = 0x9000, scoped, tag = 'internal scratch']
  %s0 = inlined_call_operand.vmem [shape: f32[32,48], index: 0, kind: input, shape index: {}]
  %s1 = inlined_call_operand.vmem [shape: bf16[48,32], index: 1, kind: input, shape index: {}]
  %s2 = inlined_call_operand.vmem [shape: f32[1,32], index: 2, kind: input, shape index: {}]
  %s3 = inlined_call_operand.vmem [shape: f32[32,32], index: 3, kind: output, shape index: {}]
  %s4 = sld [smem:[#allocation0]]
  $region22: #{beit_forward.8} parent=0
    _
  %s6 = ssub.s32 1, %s4
  %s7 = scalar_select 0, %s6, %s4
  // Predicated region
  $region2: #{beit_forward.8} parent=0 // pred_check
    _
  $region3: #{beit_forward.8} parent=0 // pred_check_branch
    %9 = sbr.rel (0) target = $region5
  $region4: #{beit_forward.8} parent=0 // pred_region
    _
  $region5: #{beit_forward.8} parent=0 // pred_fallthru
    _
  // Predicated region
  $region6: #{beit_forward.8} parent=0 // pred_check
    _
  $region7: #{beit_forward.8} parent=0 // pred_check_branch
    %11 = sbr.rel (0) target = $region9
  $region8: #{beit_forward.8} parent=0 // pred_region
    _
  $region9: #{beit_forward.8} parent=0 // pred_fallthru
    _
  // Predicated region
  $region10: #{beit_forward.8} parent=0 // pred_check
    _
  $region11: #{beit_forward.8} parent=0 // pred_check_branch
    %13 = sbr.rel (0) target = $region13
  $region12: #{beit_forward.8} parent=0 // pred_region
    _
  $region13: #{beit_forward.8} parent=0 // pred_fallthru
    _
  %v15 = vld [vmem:[%s0] sm:$0xff]
  %v16 = vld [vmem:[%s0 + $0x8] sm:$0xff]
  %v17 = vld [vmem:[%s0 + $0x10] sm:$0xff]
  %v18 = vld [vmem:[%s0 + $0x18] sm:$0xff]
  %v19 = vpack.c.bf16 %v16, %v15
  %v20 = vpack.c.bf16 %v18, %v17
  %v21 = vld [vmem:[%s1] sm:$0xf]
  %v22 = vld [vmem:[%s1 + $0x4] sm:$0xf]
  %v23 = vld [vmem:[%s1 + $0x8] sm:$0xf]
  %v24 = vld [vmem:[%s1 + $0xc] sm:$0xf]
  %v25 = vld [vmem:[%s1 + $0x10] sm:$0xf]
  %v26 = vld [vmem:[%s1 + $0x14] sm:$0xf]
  %v27 = vld [vmem:[%s2] sm:$0x1]
  %v29 = vperm.slane %v27, 0
  %v37 = vunpack.c.l.b16 %v21
  %v38 = vunpack.c.l.b16 %v22
  %v39 = vunpack.c.l.b16 %v23
  %v40 = vunpack.c.l.b16 %v24
  %v41 = vunpack.c.l.b16 %v25
  %v42 = vunpack.c.l.b16 %v26
  %v43 = vpack.c.b16 %v38, %v37
  %v44 = vpack.c.b16 %v40, %v39
  %v45 = vpack.c.b16 %v42, %v41
  %vm49 = vcmask 392192
  %v51 = vsel %vm49, %v19, 0
  %v54 = vsel %vm49, %v20, 0
  %56 = vmatpush.bf16.msra.mxu0 0
  %57 = vmatpush.bf16.msra.mxu0 0
  %58 = vmatpush.bf16.msra.mxu0 0
  %59 = vmatpush.bf16.msra.mxu0 0
  %60 = vmatpush.bf16.msra.mxu0 0
  %61 = vmatpush.bf16.msra.mxu0 %v45
  %62 = vmatpush.bf16.msra.mxu0 %v44
  %63 = vmatpush.bf16.msra.mxu0 %v43
  %64 = vmatmul.bf16.gmra.mxu0 %v51
  %v65 = vpop.f32.mrf.mxu0
  %v66 = vadd.f32 %v29, %v65
  %v67 = vpop.f32.mrf.mxu0
  %v68 = vadd.f32 %v29, %v67
  %69 = vmatmul.bf16.gmra.mxu0 %v54
  %v70 = vpop.f32.mrf.mxu0
  %v71 = vadd.f32 %v29, %v70
  %v72 = vpop.f32.mrf.mxu0
  %v73 = vadd.f32 %v29, %v72
  %74 = vdwg.mxu0
  %vm75 = vcmask 261120
  %76 = vst.msk [vmem:[%s3] sm:$0xff] %vm75, %v66
  %77 = vst.msk [vmem:[%s3 + $0x8] sm:$0xff] %vm75, %v68
  %78 = vst.msk [vmem:[%s3 + $0x10] sm:$0xff] %vm75, %v71
  %79 = vst.msk [vmem:[%s3 + $0x18] sm:$0xff] %vm75, %v73
  // Predicated region
  $region14: #{beit_forward.8} parent=0 // pred_check
    _
  $region15: #{beit_forward.8} parent=0 // pred_check_branch
    %81 = sbr.rel (0) target = $region17
  $region16: #{beit_forward.8} parent=0 // pred_region
    _
  $region17: #{beit_forward.8} parent=0 // pred_fallthru
    _
  // Predicated region
  $region18: #{beit_forward.8} parent=0 // pred_check
    _
  $region19: #{beit_forward.8} parent=0 // pred_check_branch
    %83 = sbr.rel (0) target = $region21
  $region20: #{beit_forward.8} parent=0 // pred_region
    _
  $region21: #{beit_forward.8} parent=0 // pred_fallthru
    _

// kernel: beit_forward.9
$region0: #{beit_forward.9}
  #allocation0 [shape = 'u32[]', space=smem, size = 0x4, offset = 0x4, fixed_abs, tag = 'smem constant byte address 0x4 - core index']
  #allocation1 [shape = 'u32[72,128]{1,0:T(1,128)}', space=vmem, size = 0x9000, scoped, tag = 'internal scratch']
  %s0 = inlined_call_operand.vmem [shape: f32[48,32], index: 0, kind: input, shape index: {}]
  %s1 = inlined_call_operand.vmem [shape: f32[1,32], index: 1, kind: input, shape index: {}]
  %s2 = inlined_call_operand.vmem [shape: f32[1,32], index: 2, kind: input, shape index: {}]
  %s3 = inlined_call_operand.vmem [shape: bf16[32,96], index: 3, kind: input, shape index: {}]
  %s4 = inlined_call_operand.vmem [shape: f32[1,96], index: 4, kind: input, shape index: {}]
  %s5 = inlined_call_operand.vmem [shape: f32[48,96], index: 5, kind: output, shape index: {}]
  %s6 = sld [smem:[#allocation0]]
  $region30: #{beit_forward.9} parent=0
    _
  %s8 = ssub.s32 1, %s6
  %s9 = scalar_select 0, %s8, %s6
  // Predicated region
  $region2: #{beit_forward.9} parent=0 // pred_check
    _
  $region3: #{beit_forward.9} parent=0 // pred_check_branch
    %11 = sbr.rel (0) target = $region5
  $region4: #{beit_forward.9} parent=0 // pred_region
    _
  $region5: #{beit_forward.9} parent=0 // pred_fallthru
    _
  // Predicated region
  $region6: #{beit_forward.9} parent=0 // pred_check
    _
  $region7: #{beit_forward.9} parent=0 // pred_check_branch
    %13 = sbr.rel (0) target = $region9
  $region8: #{beit_forward.9} parent=0 // pred_region
    _
  $region9: #{beit_forward.9} parent=0 // pred_fallthru
    _
  // Predicated region
  $region10: #{beit_forward.9} parent=0 // pred_check
    _
  $region11: #{beit_forward.9} parent=0 // pred_check_branch
    %15 = sbr.rel (0) target = $region13
  $region12: #{beit_forward.9} parent=0 // pred_region
    _
  $region13: #{beit_forward.9} parent=0 // pred_fallthru
    _
  // Predicated region
  $region14: #{beit_forward.9} parent=0 // pred_check
    _
  $region15: #{beit_forward.9} parent=0 // pred_check_branch
    %17 = sbr.rel (0) target = $region17
  $region16: #{beit_forward.9} parent=0 // pred_region
    _
  $region17: #{beit_forward.9} parent=0 // pred_fallthru
    _
  // Predicated region
  $region18: #{beit_forward.9} parent=0 // pred_check
    _
  $region19: #{beit_forward.9} parent=0 // pred_check_branch
    %19 = sbr.rel (0) target = $region21
  $region20: #{beit_forward.9} parent=0 // pred_region
    _
  $region21: #{beit_forward.9} parent=0 // pred_fallthru
    _
  %v21 = vld [vmem:[%s0] sm:$0xff]
  %v22 = vld [vmem:[%s0 + $0x8] sm:$0xff]
  %v23 = vld [vmem:[%s0 + $0x10] sm:$0xff]
  %v24 = vld [vmem:[%s0 + $0x18] sm:$0xff]
  %v25 = vld [vmem:[%s0 + $0x20] sm:$0xff]
  %v26 = vld [vmem:[%s0 + $0x28] sm:$0xff]
  %vm27 = vcmask 261120
  %v28 = vsel %vm27, %v21, 0.0
  %29 = vadd.xlane.f32.xlu0 %v28
  %v30 = vpop.xlane.xlu0 %29
  %v31 = vsel %vm27, %v22, 0.0
  %32 = vadd.xlane.f32.xlu0 %v31
  %v33 = vpop.xlane.xlu0 %32
  %v34 = vsel %vm27, %v23, 0.0
  %35 = vadd.xlane.f32.xlu0 %v34
  %v36 = vpop.xlane.xlu0 %35
  %v37 = vsel %vm27, %v24, 0.0
  %38 = vadd.xlane.f32.xlu0 %v37
  %v39 = vpop.xlane.xlu0 %38
  %v40 = vsel %vm27, %v25, 0.0
  %41 = vadd.xlane.f32.xlu0 %v40
  %v42 = vpop.xlane.xlu0 %41
  %v43 = vsel %vm27, %v26, 0.0
  %44 = vadd.xlane.f32.xlu0 %v43
  %v45 = vpop.xlane.xlu0 %44
  %v46 = vrcp.pop 32.0
  %v47 = vmul.f32 32.0, %v46
  %v48 = vsub.f32 1.0, %v47
  %v49 = vmul.f32 %v46, %v48
  %v50 = vadd.f32 %v46, %v49
  %vm51 = vweird.f32 %v46
  %v52 = vsel %vm51, %v46, %v50
  %v53 = vmul.f32 %v30, %v52
  %v54 = vmul.f32 %v33, %v52
  %v55 = vmul.f32 %v36, %v52
  %v56 = vmul.f32 %v39, %v52
  %v57 = vmul.f32 %v42, %v52
  %v58 = vmul.f32 %v45, %v52
  %v59 = vsub.f32 %v21, %v53
  %v60 = vsub.f32 %v22, %v54
  %v61 = vsub.f32 %v23, %v55
  %v62 = vsub.f32 %v24, %v56
  %v63 = vsub.f32 %v25, %v57
  %v64 = vsub.f32 %v26, %v58
  %v65 = vmul.f32 %v59, %v59
  %v66 = vmul.f32 %v60, %v60
  %v67 = vmul.f32 %v61, %v61
  %v68 = vmul.f32 %v62, %v62
  %v69 = vmul.f32 %v63, %v63
  %v70 = vmul.f32 %v64, %v64
  %v71 = vsel %vm27, %v65, 0.0
  %72 = vadd.xlane.f32.xlu0 %v71
  %v73 = vpop.xlane.xlu0 %72
  %v74 = vsel %vm27, %v66, 0.0
  %75 = vadd.xlane.f32.xlu0 %v74
  %v76 = vpop.xlane.xlu0 %75
  %v77 = vsel %vm27, %v67, 0.0
  %78 = vadd.xlane.f32.xlu0 %v77
  %v79 = vpop.xlane.xlu0 %78
  %v80 = vsel %vm27, %v68, 0.0
  %81 = vadd.xlane.f32.xlu0 %v80
  %v82 = vpop.xlane.xlu0 %81
  %v83 = vsel %vm27, %v69, 0.0
  %84 = vadd.xlane.f32.xlu0 %v83
  %v85 = vpop.xlane.xlu0 %84
  %v86 = vsel %vm27, %v70, 0.0
  %87 = vadd.xlane.f32.xlu0 %v86
  %v88 = vpop.xlane.xlu0 %87
  %v89 = vmul.f32 %v73, %v52
  %v90 = vmul.f32 %v76, %v52
  %v91 = vmul.f32 %v79, %v52
  %v92 = vmul.f32 %v82, %v52
  %v93 = vmul.f32 %v85, %v52
  %v94 = vmul.f32 %v88, %v52
  %v95 = vadd.f32 %v89, 1e-12
  %v96 = vadd.f32 %v90, 1e-12
  %v97 = vadd.f32 %v91, 1e-12
  %v98 = vadd.f32 %v92, 1e-12
  %v99 = vadd.f32 %v93, 1e-12
  %v100 = vadd.f32 %v94, 1e-12
  %v101 = vrsqrt.pop %v95
  %v102 = vmul.f32 %v101, %v95
  %v103 = vmul.f32 %v102, %v101
  %v104 = vmul.f32 0.5, %v103
  %v105 = vsub.f32 1.5, %v104
  %v106 = vmul.f32 %v101, %v105
  %vm107 = vweird.f32 %v95
  %vm108 = vweird.f32 %v101
  %vm109 = vmor %vm107, %vm108
  %v110 = vsel %vm109, %v101, %v106
  %v111 = vrsqrt.pop %v96
  %v112 = vmul.f32 %v111, %v96
  %v113 = vmul.f32 %v112, %v111
  %v114 = vmul.f32 0.5, %v113
  %v115 = vsub.f32 1.5, %v114
  %v116 = vmul.f32 %v111, %v115
  %vm117 = vweird.f32 %v96
  %vm118 = vweird.f32 %v111
  %vm119 = vmor %vm117, %vm118
  %v120 = vsel %vm119, %v111, %v116
  %v121 = vrsqrt.pop %v97
  %v122 = vmul.f32 %v121, %v97
  %v123 = vmul.f32 %v122, %v121
  %v124 = vmul.f32 0.5, %v123
  %v125 = vsub.f32 1.5, %v124
  %v126 = vmul.f32 %v121, %v125
  %vm127 = vweird.f32 %v97
  %vm128 = vweird.f32 %v121
  %vm129 = vmor %vm127, %vm128
  %v130 = vsel %vm129, %v121, %v126
  %v131 = vrsqrt.pop %v98
  %v132 = vmul.f32 %v131, %v98
  %v133 = vmul.f32 %v132, %v131
  %v134 = vmul.f32 0.5, %v133
  %v135 = vsub.f32 1.5, %v134
  %v136 = vmul.f32 %v131, %v135
  %vm137 = vweird.f32 %v98
  %vm138 = vweird.f32 %v131
  %vm139 = vmor %vm137, %vm138
  %v140 = vsel %vm139, %v131, %v136
  %v141 = vrsqrt.pop %v99
  %v142 = vmul.f32 %v141, %v99
  %v143 = vmul.f32 %v142, %v141
  %v144 = vmul.f32 0.5, %v143
  %v145 = vsub.f32 1.5, %v144
  %v146 = vmul.f32 %v141, %v145
  %vm147 = vweird.f32 %v99
  %vm148 = vweird.f32 %v141
  %vm149 = vmor %vm147, %vm148
  %v150 = vsel %vm149, %v141, %v146
  %v151 = vrsqrt.pop %v100
  %v152 = vmul.f32 %v151, %v100
  %v153 = vmul.f32 %v152, %v151
  %v154 = vmul.f32 0.5, %v153
  %v155 = vsub.f32 1.5, %v154
  %v156 = vmul.f32 %v151, %v155
  %vm157 = vweird.f32 %v100
  %vm158 = vweird.f32 %v151
  %vm159 = vmor %vm157, %vm158
  %v160 = vsel %vm159, %v151, %v156
  %v161 = vmul.f32 %v59, %v110
  %v162 = vmul.f32 %v60, %v120
  %v163 = vmul.f32 %v61, %v130
  %v164 = vmul.f32 %v62, %v140
  %v165 = vmul.f32 %v63, %v150
  %v166 = vmul.f32 %v64, %v160
  %v167 = vld [vmem:[%s1] sm:$0x1]
  %v169 = vperm.slane %v167, 0
  %v171 = vmul.f32 %v161, %v169
  %v172 = vmul.f32 %v162, %v169
  %v173 = vmul.f32 %v163, %v169
  %v174 = vmul.f32 %v164, %v169
  %v175 = vmul.f32 %v165, %v169
  %v176 = vmul.f32 %v166, %v169
  %v177 = vld [vmem:[%s2] sm:$0x1]
  %v179 = vperm.slane %v177, 0
  %v181 = vadd.f32 %v171, %v179
  %v182 = vadd.f32 %v172, %v179
  %v183 = vadd.f32 %v173, %v179
  %v184 = vadd.f32 %v174, %v179
  %v185 = vadd.f32 %v175, %v179
  %v186 = vadd.f32 %v176, %v179
  %v187 = vpack.c.bf16 %v182, %v181
  %v188 = vpack.c.bf16 %v184, %v183
  %v189 = vpack.c.bf16 %v186, %v185
  %v190 = vld [vmem:[%s3] sm:$0xf]
  %v191 = vld [vmem:[%s3 + $0x4] sm:$0xf]
  %v192 = vld [vmem:[%s3 + $0x8] sm:$0xf]
  %v193 = vld [vmem:[%s3 + $0xc] sm:$0xf]
  %v194 = vld [vmem:[%s4] sm:$0x1]
  %v196 = vperm.slane %v194, 0
  %v202 = vunpack.c.l.b16 %v190
  %v203 = vunpack.c.l.b16 %v191
  %v204 = vunpack.c.l.b16 %v192
  %v205 = vunpack.c.l.b16 %v193
  %v206 = vpack.c.b16 %v203, %v202
  %v207 = vpack.c.b16 %v205, %v204
  %v211 = vsel %vm27, %v187, 0
  %v214 = vsel %vm27, %v188, 0
  %v217 = vsel %vm27, %v189, 0
  %219 = vmatpush.bf16.msra.mxu0 0
  %220 = vmatpush.bf16.msra.mxu0 0
  %221 = vmatpush.bf16.msra.mxu0 0
  %222 = vmatpush.bf16.msra.mxu0 0
  %223 = vmatpush.bf16.msra.mxu0 0
  %224 = vmatpush.bf16.msra.mxu0 0
  %225 = vmatpush.bf16.msra.mxu0 %v207
  %226 = vmatpush.bf16.msra.mxu0 %v206
  %227 = vmatmul.bf16.gmra.mxu0 %v211
  %v228 = vpop.f32.mrf.mxu0
  %v229 = vadd.f32 %v196, %v228
  %v230 = vpop.f32.mrf.mxu0
  %v231 = vadd.f32 %v196, %v230
  %232 = vmatmul.bf16.gmra.mxu0 %v214
  %v233 = vpop.f32.mrf.mxu0
  %v234 = vadd.f32 %v196, %v233
  %v235 = vpop.f32.mrf.mxu0
  %v236 = vadd.f32 %v196, %v235
  %237 = vmatmul.bf16.gmra.mxu0 %v217
  %v238 = vpop.f32.mrf.mxu0
  %v239 = vadd.f32 %v196, %v238
  %v240 = vpop.f32.mrf.mxu0
  %v241 = vadd.f32 %v196, %v240
  %242 = vdwg.mxu0
  %vm243 = vcmask 785408
  %244 = vst.msk [vmem:[%s5] sm:$0xff] %vm243, %v229
  %245 = vst.msk [vmem:[%s5 + $0x8] sm:$0xff] %vm243, %v231
  %246 = vst.msk [vmem:[%s5 + $0x10] sm:$0xff] %vm243, %v234
  %247 = vst.msk [vmem:[%s5 + $0x18] sm:$0xff] %vm243, %v236
  %248 = vst.msk [vmem:[%s5 + $0x20] sm:$0xff] %vm243, %v239
  %249 = vst.msk [vmem:[%s5 + $0x28] sm:$0xff] %vm243, %v241
  // Predicated region
  $region22: #{beit_forward.9} parent=0 // pred_check
    _
  $region23: #{beit_forward.9} parent=0 // pred_check_branch
    %251 = sbr.rel (0) target = $region25
  $region24: #{beit_forward.9} parent=0 // pred_region
    _
  $region25: #{beit_forward.9} parent=0 // pred_fallthru
    _
  // Predicated region
  $region26: #{beit_forward.9} parent=0 // pred_check
    _
  $region27: #{beit_forward.9} parent=0 // pred_check_branch
    %253 = sbr.rel (0) target = $region29
  $region28: #{beit_forward.9} parent=0 // pred_region
    _
  $region29: #{beit_forward.9} parent=0 // pred_fallthru
    _

// kernel: beit_forward.10
$region0: #{beit_forward.10}
  #allocation0 [shape = 'u32[]', space=smem, size = 0x4, offset = 0x4, fixed_abs, tag = 'smem constant byte address 0x4 - core index']
  #allocation1 [shape = 'u32[72,128]{1,0:T(1,128)}', space=vmem, size = 0x9000, scoped, tag = 'internal scratch']
  %s0 = inlined_call_operand.vmem [shape: f32[2,24,96], index: 0, kind: input, shape index: {}]
  %s1 = inlined_call_operand.vmem [shape: f32[2,24,32], index: 1, kind: input, shape index: {}]
  %s2 = inlined_call_operand.vmem [shape: bf16[32,32], index: 2, kind: input, shape index: {}]
  %s3 = inlined_call_operand.vmem [shape: f32[1,32], index: 3, kind: input, shape index: {}]
  %s4 = inlined_call_operand.vmem [shape: f32[1,32], index: 4, kind: input, shape index: {}]
  %s5 = inlined_call_operand.vmem [shape: f32[2,24,32], index: 5, kind: output, shape index: {}]
  %s6 = sld [smem:[#allocation0]]
  $region53: #{beit_forward.10} parent=0
    _
  %s8 = ssub.s32 1, %s6
  %s9 = scalar_select 0, %s8, %s6
  loop: start=0, step=1, limit=4
  $region2: #{beit_forward.10} parent=0 // loop_pre_header
    _
  $region3: #{beit_forward.10} parent=0 // loop_header
    %s11 = sphi 0, %s15
    %p12 = scmp.ge.s32.totalorder %s11, 4
    %s21 = sphi 0, %s23
    %s24 = sphi 0, %s21
    %s25 = sphi 0, %s24
    %s41 = sphi 0, %s25
    %s47 = sphi 0, %s49
    %s50 = sphi 0, %s47
    %s51 = sphi 0, %s50
    %s67 = sphi 0, %s51
    %s71 = sphi 0, %s71
    %s73 = sphi 0, %s71
    %s74 = sphi 0, %s73
    %s88 = sphi 0, %s74
    %s92 = sphi 0, %s92
    %s94 = sphi 0, %s92
    %s95 = sphi 0, %s94
    %s109 = sphi 0, %s95
    %s113 = sphi 0, %s113
    %s115 = sphi 0, %s113
    %s116 = sphi 0, %s115
    %s130 = sphi 0, %s116
    %s136 = sphi 0, %s138
    %s139 = sphi 0, %s136
    %s140 = sphi 0, %s139
    %s156 = sphi 0, %s140
  $region4: #{beit_forward.10} parent=0 // loop_header_branch
    %14 = sbr.rel (%p12) target = $region8
  $region5: #{beit_forward.10} parent=0 // loop_body
    %s16 = ssub.s32 %s11, 1
    %s17 = ssub.s32 %s11, 2
    %s18 = sadd.s32 %s11, 1
    %s19 = ssub.s32 %s11, %s18
    %p20 = scmp.eq.s32.totalorder %s19, 0
    %s22 = sadd.s32 %s21, 1
    %s23 = scalar_select %p20, %s21, %s22
    %p26 = pneg %p20
    %p27 = scmp.eq.s32.totalorder %s11, 1
    %p28 = por %p26, %p27
    %p29 = scmp.ne.s32.totalorder %s21, %s24
    %p30 = scmp.eq.s32.totalorder %s11, 0
    %p31 = por %p29, %p30
    %p32 = scmp.ne.s32.totalorder %s21, %s24
    %p33 = scmp.eq.s32.totalorder %s16, 1
    %p34 = por %p32, %p33
    %p35 = scmp.ne.s32.totalorder %s24, %s25
    %p36 = scmp.eq.s32.totalorder %s16, 0
    %p37 = por %p35, %p36
    %p38 = scmp.ne.s32.totalorder %s24, %s25
    %p39 = scmp.eq.s32.totalorder %s17, 1
    %p40 = por %p38, %p39
    %p42 = scmp.ne.s32.totalorder %s25, %s41
    %p43 = scmp.eq.s32.totalorder %s17, 0
    %p44 = por %p42, %p43
    %s45 = ssub.s32 %s11, %s18
    %p46 = scmp.eq.s32.totalorder %s45, 0
    %s48 = sadd.s32 %s47, 1
    %s49 = scalar_select %p46, %s47, %s48
    %p52 = pneg %p46
    %p53 = scmp.eq.s32.totalorder %s11, 1
    %p54 = por %p52, %p53
    %p55 = scmp.ne.s32.totalorder %s47, %s50
    %p56 = scmp.eq.s32.totalorder %s11, 0
    %p57 = por %p55, %p56
    %p58 = scmp.ne.s32.totalorder %s47, %s50
    %p59 = scmp.eq.s32.totalorder %s16, 1
    %p60 = por %p58, %p59
    %p61 = scmp.ne.s32.totalorder %s50, %s51
    %p62 = scmp.eq.s32.totalorder %s16, 0
    %p63 = por %p61, %p62
    %p64 = scmp.ne.s32.totalorder %s50, %s51
    %p65 = scmp.eq.s32.totalorder %s17, 1
    %p66 = por %p64, %p65
    %p68 = scmp.ne.s32.totalorder %s51, %s67
    %p69 = scmp.eq.s32.totalorder %s17, 0
    %p70 = por %p68, %p69
    %s72 = sadd.s32 %s71, 1
    %p75 = scmp.eq.s32.totalorder %s11, 1
    %p76 = scmp.ne.s32.totalorder %s71, %s73
    %p77 = scmp.eq.s32.totalorder %s11, 0
    %p78 = por %p76, %p77
    %p79 = scmp.ne.s32.totalorder %s71, %s73
    %p80 = scmp.eq.s32.totalorder %s16, 1
    %p81 = por %p79, %p80
    %p82 = scmp.ne.s32.totalorder %s73, %s74
    %p83 = scmp.eq.s32.totalorder %s16, 0
    %p84 = por %p82, %p83
    %p85 = scmp.ne.s32.totalorder %s73, %s74
    %p86 = scmp.eq.s32.totalorder %s17, 1
    %p87 = por %p85, %p86
    %p89 = scmp.ne.s32.totalorder %s74, %s88
    %p90 = scmp.eq.s32.totalorder %s17, 0
    %p91 = por %p89, %p90
    %s93 = sadd.s32 %s92, 1
    %p96 = scmp.eq.s32.totalorder %s11, 1
    %p97 = scmp.ne.s32.totalorder %s92, %s94
    %p98 = scmp.eq.s32.totalorder %s11, 0
    %p99 = por %p97, %p98
    %p100 = scmp.ne.s32.totalorder %s92, %s94
    %p101 = scmp.eq.s32.totalorder %s16, 1
    %p102 = por %p100, %p101
    %p103 = scmp.ne.s32.totalorder %s94, %s95
    %p104 = scmp.eq.s32.totalorder %s16, 0
    %p105 = por %p103, %p104
    %p106 = scmp.ne.s32.totalorder %s94, %s95
    %p107 = scmp.eq.s32.totalorder %s17, 1
    %p108 = por %p106, %p107
    %p110 = scmp.ne.s32.totalorder %s95, %s109
    %p111 = scmp.eq.s32.totalorder %s17, 0
    %p112 = por %p110, %p111
    %s114 = sadd.s32 %s113, 1
    %p117 = scmp.eq.s32.totalorder %s11, 1
    %p118 = scmp.ne.s32.totalorder %s113, %s115
    %p119 = scmp.eq.s32.totalorder %s11, 0
    %p120 = por %p118, %p119
    %p121 = scmp.ne.s32.totalorder %s113, %s115
    %p122 = scmp.eq.s32.totalorder %s16, 1
    %p123 = por %p121, %p122
    %p124 = scmp.ne.s32.totalorder %s115, %s116
    %p125 = scmp.eq.s32.totalorder %s16, 0
    %p126 = por %p124, %p125
    %p127 = scmp.ne.s32.totalorder %s115, %s116
    %p128 = scmp.eq.s32.totalorder %s17, 1
    %p129 = por %p127, %p128
    %p131 = scmp.ne.s32.totalorder %s116, %s130
    %p132 = scmp.eq.s32.totalorder %s17, 0
    %p133 = por %p131, %p132
    %s134 = ssub.s32 %s11, %s18
    %p135 = scmp.eq.s32.totalorder %s134, 0
    %s137 = sadd.s32 %s136, 1
    %s138 = scalar_select %p135, %s136, %s137
    %p141 = pneg %p135
    %p142 = scmp.eq.s32.totalorder %s11, 1
    %p143 = por %p141, %p142
    %p144 = scmp.ne.s32.totalorder %s136, %s139
    %p145 = scmp.eq.s32.totalorder %s11, 0
    %p146 = por %p144, %p145
    %p147 = scmp.ne.s32.totalorder %s136, %s139
    %p148 = scmp.eq.s32.totalorder %s16, 1
    %p149 = por %p147, %p148
    %p150 = scmp.ne.s32.totalorder %s139, %s140
    %p151 = scmp.eq.s32.totalorder %s16, 0
    %p152 = por %p150, %p151
    %p153 = scmp.ne.s32.totalorder %s139, %s140
    %p154 = scmp.eq.s32.totalorder %s17, 1
    %p155 = por %p153, %p154
    %p157 = scmp.ne.s32.totalorder %s140, %s156
    %p158 = scmp.eq.s32.totalorder %s17, 0
    %p159 = por %p157, %p158
    %p160 = scmp.le.s32.totalorder 1, %s11
    %p161 = scmp.lt.s32.totalorder %s11, 3
    %p162 = pnand %p160, %p161
    %p163 = pneg %p162
    // Predicated region
    $region9: #{beit_forward.10} parent=5 // pred_check
      _
    $region10: #{beit_forward.10} parent=5 // pred_check_branch
      %165 = sbr.rel (%p162) target = $region12
    $region11: #{beit_forward.10} parent=5 // pred_region
      %s166 = ssub.s32 %s11, 1
      // Predicated region
      $region13: #{beit_forward.10} parent=11 // pred_check
        %p167 = pneg %p84
      $region14: #{beit_forward.10} parent=11 // pred_check_branch
        %169 = sbr.rel (%p167) target = $region16
      $region15: #{beit_forward.10} parent=11 // pred_region
        _
      $region16: #{beit_forward.10} parent=11 // pred_fallthru
        _
      // Predicated region
      $region17: #{beit_forward.10} parent=11 // pred_check
        %p170 = pneg %p105
      $region18: #{beit_forward.10} parent=11 // pred_check_branch
        %172 = sbr.rel (%p170) target = $region20
      $region19: #{beit_forward.10} parent=11 // pred_region
        _
      $region20: #{beit_forward.10} parent=11 // pred_fallthru
        _
      // Predicated region
      $region21: #{beit_forward.10} parent=11 // pred_check
        %p173 = pneg %p126
      $region22: #{beit_forward.10} parent=11 // pred_check_branch
        %175 = sbr.rel (%p173) target = $region24
      $region23: #{beit_forward.10} parent=11 // pred_region
        _
      $region24: #{beit_forward.10} parent=11 // pred_fallthru
        _
    $region12: #{beit_forward.10} parent=5 // pred_fallthru
      _
    %p176 = scmp.lt.s32.totalorder %s11, 2
    // Predicated region
    $region25: #{beit_forward.10} parent=5 // pred_check
      %p177 = pneg %p176
    $region26: #{beit_forward.10} parent=5 // pred_check_branch
      %179 = sbr.rel (%p177) target = $region28
    $region27: #{beit_forward.10} parent=5 // pred_region
      // Predicated region
      $region29: #{beit_forward.10} parent=27 // pred_check
        %p180 = pneg %p31
      $region30: #{beit_forward.10} parent=27 // pred_check_branch
        %182 = sbr.rel (%p180) target = $region32
      $region31: #{beit_forward.10} parent=27 // pred_region
        %p183 = scmp.lt.s32.totalorder %s11, 1
        %s184 = scalar_select %p183, %s11, 1
        %s185 = smul.addr %s184, 3
        %s186 = smul.addr %s185, 8
        %s187 = scalar_lea.vmem %s0, %s186
      $region32: #{beit_forward.10} parent=27 // pred_fallthru
        _
      // Predicated region
      $region33: #{beit_forward.10} parent=27 // pred_check
        %p188 = pneg %p57
      $region34: #{beit_forward.10} parent=27 // pred_check_branch
        %190 = sbr.rel (%p188) target = $region36
      $region35: #{beit_forward.10} parent=27 // pred_region
        %p191 = scmp.lt.s32.totalorder %s11, 1
        %s192 = scalar_select %p191, %s11, 1
        %s193 = smul.addr %s192, 3
        %s194 = smul.addr %s193, 8
        %s195 = scalar_lea.vmem %s1, %s194
      $region36: #{beit_forward.10} parent=27 // pred_fallthru
        _
    $region28: #{beit_forward.10} parent=5 // pred_fallthru
      _
    %p196 = scmp.le.s32.totalorder 1, %s11
    %p197 = scmp.lt.s32.totalorder %s11, 3
    %p198 = pnand %p196, %p197
    %p199 = pneg %p198
    // Predicated region
    $region37: #{beit_forward.10} parent=5 // pred_check
      _
    $region38: #{beit_forward.10} parent=5 // pred_check_branch
      %201 = sbr.rel (%p198) target = $region40
    $region39: #{beit_forward.10} parent=5 // pred_region
      %s202 = ssub.s32 %s11, 1
      %p203 = scmp.lt.s32.totalorder %s16, 1
      %s204 = scalar_select %p203, %s16, 1
      %s205 = smul.addr %s204, 3
      %s206 = smul.addr %s205, 8
      %s207 = scalar_lea.vmem %s0, %s206
      %p208 = pneg %p37
      %p209 = pneg %p34
      %p210 = scmp.lt.s32.totalorder %s16, 1
      %s211 = scalar_select %p210, %s16, 1
      %s212 = smul.addr %s211, 3
      %s213 = smul.addr %s212, 8
      %s214 = scalar_lea.vmem %s1, %s213
      %p215 = pneg %p63
      %p216 = pneg %p60
      %p217 = pneg %p84
      %p218 = pneg %p81
      %p219 = pneg %p105
      %p220 = pneg %p102
      %p221 = pneg %p126
      %p222 = pneg %p123
      %p223 = pneg %p152
      %p224 = pneg %p149
      %p225 = scmp.lt.s32.totalorder %s16, 1
      %s226 = scalar_select %p225, %s16, 1
      %s227 = smul.addr %s226, 3
      %s228 = smul.addr %s227, 8
      %s229 = scalar_lea.vmem %s5, %s228
      %p230 = scmp.lt.s32.totalorder %s16, 1
      %s231 = scalar_select %p230, %s16, 1
      %s232 = smul.addr %s231, 3
      %s233 = smul.addr %s232, 8
      %s234 = scalar_lea.vmem %s0, %s233
      %p235 = scmp.lt.s32.totalorder %s16, 1
      %s236 = scalar_select %p235, %s16, 1
      %s237 = smul.addr %s236, 3
      %s238 = smul.addr %s237, 8
      %s239 = scalar_lea.vmem %s1, %s238
      %p240 = scmp.lt.s32.totalorder %s16, 1
      %s241 = scalar_select %p240, %s16, 1
      %s242 = smul.addr %s241, 3
      %s243 = smul.addr %s242, 8
      %s244 = scalar_lea.vmem %s5, %s243
      %v246 = vld [vmem:[%s234] sm:$0xff]
      %v247 = vld [vmem:[%s234 + $0x8] sm:$0xff]
      %v248 = vld [vmem:[%s234 + $0x10] sm:$0xff]
      %v249 = vld [vmem:[%s2] sm:$0xf]
      %v250 = vld [vmem:[%s2 + $0x4] sm:$0xf]
      %v251 = vld [vmem:[%s2 + $0x8] sm:$0xf]
      %v252 = vld [vmem:[%s2 + $0xc] sm:$0xf]
      %v253 = vpack.c.bf16 %v247, %v246
      %v254 = vpack.c.bf16 %v248, %v248
      %257 = vrot.lane.b32.xlu0 %v253, 96
      %v258 = vpop.permute.xlu0 %257
      %259 = vrot.lane.b32.xlu0 %v254, 96
      %v260 = vpop.permute.xlu0 %259
      %vm261 = vcmask 64512
      %v263 = vsel %vm261, %v253, 0
      %v266 = vsel %vm261, %v254, 0
      %v269 = vsel %vm261, %v258, 0
      %v272 = vsel %vm261, %v260, 0
      %274 = vmatpush.bf16.xpose.msra.mxu0 0
      %275 = vmatpush.bf16.xpose.msra.mxu0 0
      %276 = vmatpush.bf16.xpose.msra.mxu0 0
      %277 = vmatpush.bf16.xpose.msra.mxu0 0
      %278 = vmatpush.bf16.xpose.msra.mxu0 0
      %279 = vmatpush.bf16.xpose.msra.mxu0 0
      %280 = vmatpush.bf16.xpose.msra.mxu0 %v272
      %281 = vmatpush.bf16.xpose.msra.mxu0 %v269
      %282 = vmatmul.bf16.gmra.mxu0 %v263
      %v283 = vpop.f32.mrf.mxu0
      %v284 = vadd.f32 0.0, %v283
      %v285 = vpop.f32.mrf.mxu0
      %v286 = vadd.f32 0.0, %v285
      %287 = vmatmul.bf16.gmra.mxu0 %v266
      %v288 = vpop.f32.mrf.mxu0
      %v289 = vadd.f32 0.0, %v288
      %v290 = vpop.f32.mrf.mxu0
      %291 = vdwg.mxu0
      %v292 = vmul.f32 %v284, 0.35355338
      %v293 = vmul.f32 %v286, 0.35355338
      %v294 = vmul.f32 %v289, 0.35355338
      %v295 = vlaneseq
      %v296 = vand.u32 %v295, 127
      %vm297 = vcmp.lt.s32.totalorder %v296, 17
      %v298 = vsel %vm297, %v292, -1e+30
      %v299 = vsel %vm297, %v293, -1e+30
      %v300 = vsel %vm297, %v294, -1e+30
      %vm301 = vcmask 195584
      %v302 = vsel %vm301, %v298, -inf
      %303 = vmax.xlane.f32.xlu0 %v302
      %v304 = vpop.xlane.xlu0 %303
      %v305 = vsel %vm301, %v299, -inf
      %306 = vmax.xlane.f32.xlu0 %v305
      %v307 = vpop.xlane.xlu0 %306
      %v308 = vsel %vm301, %v300, -inf
      %309 = vmax.xlane.f32.xlu0 %v308
      %v310 = vpop.xlane.xlu0 %309
      %v311 = vsub.f32 %v298, %v304
      %v312 = vsub.f32 %v299, %v307
      %v313 = vsub.f32 %v300, %v310
      %v314 = vmul.f32 %v311, 1.442695
      %v315 = vpow.pop %v314
      %v316 = vmul.f32 %v312, 1.442695
      %v317 = vpow.pop %v316
      %v318 = vmul.f32 %v313, 1.442695
      %v319 = vpow.pop %v318
      %v320 = vsel %vm301, %v315, 0.0
      %321 = vadd.xlane.f32.xlu0 %v320
      %v322 = vpop.xlane.xlu0 %321
      %v323 = vsel %vm301, %v317, 0.0
      %324 = vadd.xlane.f32.xlu0 %v323
      %v325 = vpop.xlane.xlu0 %324
      %v326 = vsel %vm301, %v319, 0.0
      %327 = vadd.xlane.f32.xlu0 %v326
      %v328 = vpop.xlane.xlu0 %327
      %v329 = vrcp.pop %v322
      %v330 = vrcp.pop %v325
      %v331 = vrcp.pop %v328
      %v332 = vmul.f32 %v315, %v329
      %v333 = vmul.f32 %v317, %v330
      %v334 = vmul.f32 %v319, %v331
      %v335 = vpack.c.bf16 %v333, %v332
      %v336 = vpack.c.bf16 %v334, %v334
      %337 = vrot.lane.b32.xlu0 %v253, 64
      %v338 = vpop.permute.xlu0 %337
      %339 = vrot.lane.b32.xlu0 %v254, 64
      %v340 = vpop.permute.xlu0 %339
      %v343 = vsel %vm301, %v335, 0
      %v346 = vsel %vm301, %v336, 0
      %vm348 = vcmask 1043456
      %v350 = vsel %vm348, %v340, 0
      %352 = vmatpush.bf16.msra.mxu0 0
      %353 = vmatpush.bf16.msra.mxu0 0
      %354 = vmatpush.bf16.msra.mxu0 0
      %355 = vmatpush.bf16.msra.mxu0 0
      %356 = vmatpush.bf16.msra.mxu0 0
      %357 = vmatpush.bf16.msra.mxu0 0
      %358 = vmatpush.bf16.msra.mxu0 %v350
      %359 = vmatpush.bf16.msra.mxu0 %v338
      %360 = vmatmul.bf16.gmra.mxu0 %v343
      %v361 = vpop.f32.mrf.mxu0
      %v362 = vadd.f32 0.0, %v361
      %v363 = vpop.f32.mrf.mxu0
      %v364 = vadd.f32 0.0, %v363
      %365 = vmatmul.bf16.gmra.mxu0 %v346
      %v366 = vpop.f32.mrf.mxu0
      %v367 = vadd.f32 0.0, %v366
      %v368 = vpop.f32.mrf.mxu0
      %369 = vdwg.mxu0
      %v370 = vpack.c.bf16 %v364, %v362
      %v371 = vpack.c.bf16 %v367, %v367
      %372 = vrot.lane.b32.xlu0 %v253, 120
      %v373 = vpop.permute.xlu0 %372
      %374 = vrot.lane.b32.xlu0 %v254, 120
      %v375 = vpop.permute.xlu0 %374
      %376 = vrot.lane.b32.xlu0 %v253, 88
      %v377 = vpop.permute.xlu0 %376
      %378 = vrot.lane.b32.xlu0 %v254, 88
      %v379 = vpop.permute.xlu0 %378
      %v381 = vsel %vm261, %v373, 0
      %v384 = vsel %vm261, %v375, 0
      %v387 = vsel %vm261, %v377, 0
      %v390 = vsel %vm261, %v379, 0
      %392 = vmatpush.bf16.xpose.msra.mxu0 0
      %393 = vmatpush.bf16.xpose.msra.mxu0 0
      %394 = vmatpush.bf16.xpose.msra.mxu0 0
      %395 = vmatpush.bf16.xpose.msra.mxu0 0
      %396 = vmatpush.bf16.xpose.msra.mxu0 0
      %397 = vmatpush.bf16.xpose.msra.mxu0 0
      %398 = vmatpush.bf16.xpose.msra.mxu0 %v390
      %399 = vmatpush.bf16.xpose.msra.mxu0 %v387
      %400 = vmatmul.bf16.gmra.mxu0 %v381
      %v401 = vpop.f32.mrf.mxu0
      %v402 = vadd.f32 0.0, %v401
      %v403 = vpop.f32.mrf.mxu0
      %v404 = vadd.f32 0.0, %v403
      %405 = vmatmul.bf16.gmra.mxu0 %v384
      %v406 = vpop.f32.mrf.mxu0
      %v407 = vadd.f32 0.0, %v406
      %v408 = vpop.f32.mrf.mxu0
      %409 = vdwg.mxu0
      %v410 = vmul.f32 %v402, 0.35355338
      %v411 = vmul.f32 %v404, 0.35355338
      %v412 = vmul.f32 %v407, 0.35355338
      %v413 = vsel %vm297, %v410, -1e+30
      %v414 = vsel %vm297, %v411, -1e+30
      %v415 = vsel %vm297, %v412, -1e+30
      %v416 = vsel %vm301, %v413, -inf
      %417 = vmax.xlane.f32.xlu0 %v416
      %v418 = vpop.xlane.xlu0 %417
      %v419 = vsel %vm301, %v414, -inf
      %420 = vmax.xlane.f32.xlu0 %v419
      %v421 = vpop.xlane.xlu0 %420
      %v422 = vsel %vm301, %v415, -inf
      %423 = vmax.xlane.f32.xlu0 %v422
      %v424 = vpop.xlane.xlu0 %423
      %v425 = vsub.f32 %v413, %v418
      %v426 = vsub.f32 %v414, %v421
      %v427 = vsub.f32 %v415, %v424
      %v428 = vmul.f32 %v425, 1.442695
      %v429 = vpow.pop %v428
      %v430 = vmul.f32 %v426, 1.442695
      %v431 = vpow.pop %v430
      %v432 = vmul.f32 %v427, 1.442695
      %v433 = vpow.pop %v432
      %v434 = vsel %vm301, %v429, 0.0
      %435 = vadd.xlane.f32.xlu0 %v434
      %v436 = vpop.xlane.xlu0 %435
      %v437 = vsel %vm301, %v431, 0.0
      %438 = vadd.xlane.f32.xlu0 %v437
      %v439 = vpop.xlane.xlu0 %438
      %v440 = vsel %vm301, %v433, 0.0
      %441 = vadd.xlane.f32.xlu0 %v440
      %v442 = vpop.xlane.xlu0 %441
      %v443 = vrcp.pop %v436
      %v444 = vrcp.pop %v439
      %v445 = vrcp.pop %v442
      %v446 = vmul.f32 %v429, %v443
      %v447 = vmul.f32 %v431, %v444
      %v448 = vmul.f32 %v433, %v445
      %v449 = vpack.c.bf16 %v447, %v446
      %v450 = vpack.c.bf16 %v448, %v448
      %451 = vrot.lane.b32.xlu0 %v253, 56
      %v452 = vpop.permute.xlu0 %451
      %453 = vrot.lane.b32.xlu0 %v254, 56
      %v454 = vpop.permute.xlu0 %453
      %v457 = vsel %vm301, %v449, 0
      %v460 = vsel %vm301, %v450, 0
      %v463 = vsel %vm348, %v454, 0
      %465 = vmatpush.bf16.msra.mxu0 0
      %466 = vmatpush.bf16.msra.mxu0 0
      %467 = vmatpush.bf16.msra.mxu0 0
      %468 = vmatpush.bf16.msra.mxu0 0
      %469 = vmatpush.bf16.msra.mxu0 0
      %470 = vmatpush.bf16.msra.mxu0 0
      %471 = vmatpush.bf16.msra.mxu0 %v463
      %472 = vmatpush.bf16.msra.mxu0 %v452
      %473 = vmatmul.bf16.gmra.mxu0 %v457
      %v474 = vpop.f32.mrf.mxu0
      %v475 = vadd.f32 0.0, %v474
      %v476 = vpop.f32.mrf.mxu0
      %v477 = vadd.f32 0.0, %v476
      %478 = vmatmul.bf16.gmra.mxu0 %v460
      %v479 = vpop.f32.mrf.mxu0
      %v480 = vadd.f32 0.0, %v479
      %v481 = vpop.f32.mrf.mxu0
      %482 = vdwg.mxu0
      %v483 = vpack.c.bf16 %v477, %v475
      %v484 = vpack.c.bf16 %v480, %v480
      %v486 = vsel %vm261, %v483, 0
      %v489 = vsel %vm261, %v484, 0
      %v492 = vsel %vm348, %v250, 0
      %494 = vmatpush.bf16.msra.mxu0 0
      %495 = vmatpush.bf16.msra.mxu0 0
      %496 = vmatpush.bf16.msra.mxu0 0
      %497 = vmatpush.bf16.msra.mxu0 0
      %498 = vmatpush.bf16.msra.mxu0 0
      %499 = vmatpush.bf16.msra.mxu0 0
      %500 = vmatpush.bf16.msra.mxu0 0
      %501 = vmatpush.bf16.msra.mxu0 %v492
      %502 = vmatmul.bf16.gmra.mxu0 %v486
      %v503 = vpop.f32.mrf.mxu0
      %v504 = vadd.f32 0.0, %v503
      %v505 = vpop.f32.mrf.mxu0
      %v506 = vadd.f32 0.0, %v505
      %507 = vmatmul.bf16.gmra.mxu0 %v489
      %v508 = vpop.f32.mrf.mxu0
      %v509 = vadd.f32 0.0, %v508
      %v510 = vpop.f32.mrf.mxu0
      %511 = vdwg.mxu0
      %v513 = vsel %vm261, %v370, 0
      %v516 = vsel %vm261, %v371, 0
      %v519 = vsel %vm348, %v249, 0
      %521 = vmatpush.bf16.msra.mxu0 0
      %522 = vmatpush.bf16.msra.mxu0 0
      %523 = vmatpush.bf16.msra.mxu0 0
      %524 = vmatpush.bf16.msra.mxu0 0
      %525 = vmatpush.bf16.msra.mxu0 0
      %526 = vmatpush.bf16.msra.mxu0 0
      %527 = vmatpush.bf16.msra.mxu0 0
      %528 = vmatpush.bf16.msra.mxu0 %v519
      %529 = vmatmul.bf16.gmra.mxu0 %v513
      %v530 = vpop.f32.mrf.mxu0
      %v531 = vadd.f32 %v504, %v530
      %v532 = vpop.f32.mrf.mxu0
      %v533 = vadd.f32 %v506, %v532
      %534 = vmatmul.bf16.gmra.mxu0 %v516
      %v535 = vpop.f32.mrf.mxu0
      %v536 = vadd.f32 %v509, %v535
      %v537 = vpop.f32.mrf.mxu0
      %538 = vdwg.mxu0
      %539 = vrot.lane.b32.xlu0 %v253, 112
      %v540 = vpop.permute.xlu0 %539
      %541 = vrot.lane.b32.xlu0 %v254, 112
      %v542 = vpop.permute.xlu0 %541
      %543 = vrot.lane.b32.xlu0 %v253, 80
      %v544 = vpop.permute.xlu0 %543
      %545 = vrot.lane.b32.xlu0 %v254, 80
      %v546 = vpop.permute.xlu0 %545
      %v548 = vsel %vm261, %v540, 0
      %v551 = vsel %vm261, %v542, 0
      %v554 = vsel %vm261, %v544, 0
      %v557 = vsel %vm261, %v546, 0
      %559 = vmatpush.bf16.xpose.msra.mxu0 0
      %560 = vmatpush.bf16.xpose.msra.mxu0 0
      %561 = vmatpush.bf16.xpose.msra.mxu0 0
      %562 = vmatpush.bf16.xpose.msra.mxu0 0
      %563 = vmatpush.bf16.xpose.msra.mxu0 0
      %564 = vmatpush.bf16.xpose.msra.mxu0 0
      %565 = vmatpush.bf16.xpose.msra.mxu0 %v557
      %566 = vmatpush.bf16.xpose.msra.mxu0 %v554
      %567 = vmatmul.bf16.gmra.mxu0 %v548
      %v568 = vpop.f32.mrf.mxu0
      %v569 = vadd.f32 0.0, %v568
      %v570 = vpop.f32.mrf.mxu0
      %v571 = vadd.f32 0.0, %v570
      %572 = vmatmul.bf16.gmra.mxu0 %v551
      %v573 = vpop.f32.mrf.mxu0
      %v574 = vadd.f32 0.0, %v573
      %v575 = vpop.f32.mrf.mxu0
      %576 = vdwg.mxu0
      %v577 = vmul.f32 %v569, 0.35355338
      %v578 = vmul.f32 %v571, 0.35355338
      %v579 = vmul.f32 %v574, 0.35355338
      %v580 = vsel %vm297, %v577, -1e+30
      %v581 = vsel %vm297, %v578, -1e+30
      %v582 = vsel %vm297, %v579, -1e+30
      %v583 = vsel %vm301, %v580, -inf
      %584 = vmax.xlane.f32.xlu0 %v583
      %v585 = vpop.xlane.xlu0 %584
      %v586 = vsel %vm301, %v581, -inf
      %587 = vmax.xlane.f32.xlu0 %v586
      %v588 = vpop.xlane.xlu0 %587
      %v589 = vsel %vm301, %v582, -inf
      %590 = vmax.xlane.f32.xlu0 %v589
      %v591 = vpop.xlane.xlu0 %590
      %v592 = vsub.f32 %v580, %v585
      %v593 = vsub.f32 %v581, %v588
      %v594 = vsub.f32 %v582, %v591
      %v595 = vmul.f32 %v592, 1.442695
      %v596 = vpow.pop %v595
      %v597 = vmul.f32 %v593, 1.442695
      %v598 = vpow.pop %v597
      %v599 = vmul.f32 %v594, 1.442695
      %v600 = vpow.pop %v599
      %v601 = vsel %vm301, %v596, 0.0
      %602 = vadd.xlane.f32.xlu0 %v601
      %v603 = vpop.xlane.xlu0 %602
      %v604 = vsel %vm301, %v598, 0.0
      %605 = vadd.xlane.f32.xlu0 %v604
      %v606 = vpop.xlane.xlu0 %605
      %v607 = vsel %vm301, %v600, 0.0
      %608 = vadd.xlane.f32.xlu0 %v607
      %v609 = vpop.xlane.xlu0 %608
      %v610 = vrcp.pop %v603
      %v611 = vrcp.pop %v606
      %v612 = vrcp.pop %v609
      %v613 = vmul.f32 %v596, %v610
      %v614 = vmul.f32 %v598, %v611
      %v615 = vmul.f32 %v600, %v612
      %v616 = vpack.c.bf16 %v614, %v613
      %v617 = vpack.c.bf16 %v615, %v615
      %618 = vrot.lane.b32.xlu0 %v253, 48
      %v619 = vpop.permute.xlu0 %618
      %620 = vrot.lane.b32.xlu0 %v254, 48
      %v621 = vpop.permute.xlu0 %620
      %v624 = vsel %vm301, %v616, 0
      %v627 = vsel %vm301, %v617, 0
      %v630 = vsel %vm348, %v621, 0
      %632 = vmatpush.bf16.msra.mxu0 0
      %633 = vmatpush.bf16.msra.mxu0 0
      %634 = vmatpush.bf16.msra.mxu0 0
      %635 = vmatpush.bf16.msra.mxu0 0
      %636 = vmatpush.bf16.msra.mxu0 0
      %637 = vmatpush.bf16.msra.mxu0 0
      %638 = vmatpush.bf16.msra.mxu0 %v630
      %639 = vmatpush.bf16.msra.mxu0 %v619
      %640 = vmatmul.bf16.gmra.mxu0 %v624
      %v641 = vpop.f32.mrf.mxu0
      %v642 = vadd.f32 0.0, %v641
      %v643 = vpop.f32.mrf.mxu0
      %v644 = vadd.f32 0.0, %v643
      %645 = vmatmul.bf16.gmra.mxu0 %v627
      %v646 = vpop.f32.mrf.mxu0
      %v647 = vadd.f32 0.0, %v646
      %v648 = vpop.f32.mrf.mxu0
      %649 = vdwg.mxu0
      %v650 = vpack.c.bf16 %v644, %v642
      %v651 = vpack.c.bf16 %v647, %v647
      %v653 = vsel %vm261, %v650, 0
      %v656 = vsel %vm261, %v651, 0
      %v659 = vsel %vm348, %v251, 0
      %661 = vmatpush.bf16.msra.mxu0 0
      %662 = vmatpush.bf16.msra.mxu0 0
      %663 = vmatpush.bf16.msra.mxu0 0
      %664 = vmatpush.bf16.msra.mxu0 0
      %665 = vmatpush.bf16.msra.mxu0 0
      %666 = vmatpush.bf16.msra.mxu0 0
      %667 = vmatpush.bf16.msra.mxu0 0
      %668 = vmatpush.bf16.msra.mxu0 %v659
      %669 = vmatmul.bf16.gmra.mxu0 %v653
      %v670 = vpop.f32.mrf.mxu0
      %v671 = vadd.f32 0.0, %v670
      %v672 = vpop.f32.mrf.mxu0
      %v673 = vadd.f32 0.0, %v672
      %674 = vmatmul.bf16.gmra.mxu0 %v656
      %v675 = vpop.f32.mrf.mxu0
      %v676 = vadd.f32 0.0, %v675
      %v677 = vpop.f32.mrf.mxu0
      %678 = vdwg.mxu0
      %v679 = vadd.f32 %v531, %v671
      %v680 = vadd.f32 %v533, %v673
      %v681 = vadd.f32 %v536, %v676
      %682 = vrot.lane.b32.xlu0 %v253, 104
      %v683 = vpop.permute.xlu0 %682
      %684 = vrot.lane.b32.xlu0 %v254, 104
      %v685 = vpop.permute.xlu0 %684
      %686 = vrot.lane.b32.xlu0 %v253, 72
      %v687 = vpop.permute.xlu0 %686
      %688 = vrot.lane.b32.xlu0 %v254, 72
      %v689 = vpop.permute.xlu0 %688
      %v691 = vsel %vm261, %v683, 0
      %v694 = vsel %vm261, %v685, 0
      %v697 = vsel %vm261, %v687, 0
      %v700 = vsel %vm261, %v689, 0
      %702 = vmatpush.bf16.xpose.msra.mxu0 0
      %703 = vmatpush.bf16.xpose.msra.mxu0 0
      %704 = vmatpush.bf16.xpose.msra.mxu0 0
      %705 = vmatpush.bf16.xpose.msra.mxu0 0
      %706 = vmatpush.bf16.xpose.msra.mxu0 0
      %707 = vmatpush.bf16.xpose.msra.mxu0 0
      %708 = vmatpush.bf16.xpose.msra.mxu0 %v700
      %709 = vmatpush.bf16.xpose.msra.mxu0 %v697
      %710 = vmatmul.bf16.gmra.mxu0 %v691
      %v711 = vpop.f32.mrf.mxu0
      %v712 = vadd.f32 0.0, %v711
      %v713 = vpop.f32.mrf.mxu0
      %v714 = vadd.f32 0.0, %v713
      %715 = vmatmul.bf16.gmra.mxu0 %v694
      %v716 = vpop.f32.mrf.mxu0
      %v717 = vadd.f32 0.0, %v716
      %v718 = vpop.f32.mrf.mxu0
      %719 = vdwg.mxu0
      %v720 = vmul.f32 %v712, 0.35355338
      %v721 = vmul.f32 %v714, 0.35355338
      %v722 = vmul.f32 %v717, 0.35355338
      %v723 = vsel %vm297, %v720, -1e+30
      %v724 = vsel %vm297, %v721, -1e+30
      %v725 = vsel %vm297, %v722, -1e+30
      %v726 = vsel %vm301, %v723, -inf
      %727 = vmax.xlane.f32.xlu0 %v726
      %v728 = vpop.xlane.xlu0 %727
      %v729 = vsel %vm301, %v724, -inf
      %730 = vmax.xlane.f32.xlu0 %v729
      %v731 = vpop.xlane.xlu0 %730
      %v732 = vsel %vm301, %v725, -inf
      %733 = vmax.xlane.f32.xlu0 %v732
      %v734 = vpop.xlane.xlu0 %733
      %v735 = vsub.f32 %v723, %v728
      %v736 = vsub.f32 %v724, %v731
      %v737 = vsub.f32 %v725, %v734
      %v738 = vmul.f32 %v735, 1.442695
      %v739 = vpow.pop %v738
      %v740 = vmul.f32 %v736, 1.442695
      %v741 = vpow.pop %v740
      %v742 = vmul.f32 %v737, 1.442695
      %v743 = vpow.pop %v742
      %v744 = vsel %vm301, %v739, 0.0
      %745 = vadd.xlane.f32.xlu0 %v744
      %v746 = vpop.xlane.xlu0 %745
      %v747 = vsel %vm301, %v741, 0.0
      %748 = vadd.xlane.f32.xlu0 %v747
      %v749 = vpop.xlane.xlu0 %748
      %v750 = vsel %vm301, %v743, 0.0
      %751 = vadd.xlane.f32.xlu0 %v750
      %v752 = vpop.xlane.xlu0 %751
      %v753 = vrcp.pop %v746
      %v754 = vrcp.pop %v749
      %v755 = vrcp.pop %v752
      %v756 = vmul.f32 %v739, %v753
      %v757 = vmul.f32 %v741, %v754
      %v758 = vmul.f32 %v743, %v755
      %v759 = vpack.c.bf16 %v757, %v756
      %v760 = vpack.c.bf16 %v758, %v758
      %761 = vrot.lane.b32.xlu0 %v253, 40
      %v762 = vpop.permute.xlu0 %761
      %763 = vrot.lane.b32.xlu0 %v254, 40
      %v764 = vpop.permute.xlu0 %763
      %v767 = vsel %vm301, %v759, 0
      %v770 = vsel %vm301, %v760, 0
      %v773 = vsel %vm348, %v764, 0
      %775 = vmatpush.bf16.msra.mxu0 0
      %776 = vmatpush.bf16.msra.mxu0 0
      %777 = vmatpush.bf16.msra.mxu0 0
      %778 = vmatpush.bf16.msra.mxu0 0
      %779 = vmatpush.bf16.msra.mxu0 0
      %780 = vmatpush.bf16.msra.mxu0 0
      %781 = vmatpush.bf16.msra.mxu0 %v773
      %782 = vmatpush.bf16.msra.mxu0 %v762
      %783 = vmatmul.bf16.gmra.mxu0 %v767
      %v784 = vpop.f32.mrf.mxu0
      %v785 = vadd.f32 0.0, %v784
      %v786 = vpop.f32.mrf.mxu0
      %v787 = vadd.f32 0.0, %v786
      %788 = vmatmul.bf16.gmra.mxu0 %v770
      %v789 = vpop.f32.mrf.mxu0
      %v790 = vadd.f32 0.0, %v789
      %v791 = vpop.f32.mrf.mxu0
      %792 = vdwg.mxu0
      %v793 = vpack.c.bf16 %v787, %v785
      %v794 = vpack.c.bf16 %v790, %v790
      %v796 = vsel %vm261, %v793, 0
      %v799 = vsel %vm261, %v794, 0
      %v802 = vsel %vm348, %v252, 0
      %804 = vmatpush.bf16.msra.mxu0 0
      %805 = vmatpush.bf16.msra.mxu0 0
      %806 = vmatpush.bf16.msra.mxu0 0
      %807 = vmatpush.bf16.msra.mxu0 0
      %808 = vmatpush.bf16.msra.mxu0 0
      %809 = vmatpush.bf16.msra.mxu0 0
      %810 = vmatpush.bf16.msra.mxu0 0
      %811 = vmatpush.bf16.msra.mxu0 %v802
      %812 = vmatmul.bf16.gmra.mxu0 %v796
      %v813 = vpop.f32.mrf.mxu0
      %v814 = vadd.f32 0.0, %v813
      %v815 = vpop.f32.mrf.mxu0
      %v816 = vadd.f32 0.0, %v815
      %817 = vmatmul.bf16.gmra.mxu0 %v799
      %v818 = vpop.f32.mrf.mxu0
      %v819 = vadd.f32 0.0, %v818
      %v820 = vpop.f32.mrf.mxu0
      %821 = vdwg.mxu0
      %v822 = vadd.f32 %v679, %v814
      %v823 = vadd.f32 %v680, %v816
      %v824 = vadd.f32 %v681, %v819
      %v825 = vld [vmem:[%s3] sm:$0x1]
      %v827 = vperm.slane %v825, 0
      %v829 = vadd.f32 %v822, %v827
      %v830 = vadd.f32 %v823, %v827
      %v831 = vadd.f32 %v824, %v827
      %v832 = vld [vmem:[%s239] sm:$0xff]
      %v833 = vld [vmem:[%s239 + $0x8] sm:$0xff]
      %v834 = vld [vmem:[%s239 + $0x10] sm:$0xff]
      %v835 = vld [vmem:[%s4] sm:$0x1]
      %v837 = vperm.slane %v835, 0
      %v839 = vmul.f32 %v837, %v829
      %v840 = vmul.f32 %v837, %v830
      %v841 = vmul.f32 %v837, %v831
      %v842 = vadd.f32 %v832, %v839
      %v843 = vadd.f32 %v833, %v840
      %v844 = vadd.f32 %v834, %v841
      %vm845 = vcmask 261120
      %846 = vst.msk [vmem:[%s244] sm:$0xff] %vm845, %v842
      %847 = vst.msk [vmem:[%s244 + $0x8] sm:$0xff] %vm845, %v843
      %848 = vst.msk [vmem:[%s244 + $0x10] sm:$0xff] %vm845, %v844
      %p849 = scmp.lt.s32.totalorder %s16, 1
      %s850 = scalar_select %p849, %s16, 1
      %s851 = smul.addr %s850, 3
      %s852 = smul.addr %s851, 8
      %s853 = scalar_lea.vmem %s5, %s852
      // Predicated region
      $region41: #{beit_forward.10} parent=39 // pred_check
        %p854 = pneg %p149
      $region42: #{beit_forward.10} parent=39 // pred_check_branch
        %856 = sbr.rel (%p854) target = $region44
      $region43: #{beit_forward.10} parent=39 // pred_region
        _
      $region44: #{beit_forward.10} parent=39 // pred_fallthru
        _
    $region40: #{beit_forward.10} parent=5 // pred_fallthru
      _
    %p857 = scmp.le.s32.totalorder 2, %s11
    // Predicated region
    $region45: #{beit_forward.10} parent=5 // pred_check
      %p858 = pneg %p857
    $region46: #{beit_forward.10} parent=5 // pred_check_branch
      %860 = sbr.rel (%p858) target = $region48
    $region47: #{beit_forward.10} parent=5 // pred_region
      %s861 = ssub.s32 %s11, 2
      // Predicated region
      $region49: #{beit_forward.10} parent=47 // pred_check
        %p862 = pneg %p155
      $region50: #{beit_forward.10} parent=47 // pred_check_branch
        %864 = sbr.rel (%p862) target = $region52
      $region51: #{beit_forward.10} parent=47 // pred_region
        %p865 = scmp.lt.s32.totalorder %s17, 1
        %s866 = scalar_select %p865, %s17, 1
        %s867 = smul.addr %s866, 3
        %s868 = smul.addr %s867, 8
        %s869 = scalar_lea.vmem %s5, %s868
      $region52: #{beit_forward.10} parent=47 // pred_fallthru
        _
    $region48: #{beit_forward.10} parent=5 // pred_fallthru
      _
  $region6: #{beit_forward.10} parent=0 // loop_footer
    %s15 = sadd.s32 1, %s11
  $region7: #{beit_forward.10} parent=0 // loop_footer_branch
    %10 = sbr.rel target = $region3
  $region8: #{beit_forward.10} parent=0 // loop_exit
    _

// kernel: beit_forward.11
$region0: #{beit_forward.11}
  #allocation0 [shape = 'u32[]', space=smem, size = 0x4, offset = 0x4, fixed_abs, tag = 'smem constant byte address 0x4 - core index']
  #allocation1 [shape = 'u32[72,128]{1,0:T(1,128)}', space=vmem, size = 0x9000, scoped, tag = 'internal scratch']
  %s0 = inlined_call_operand.vmem [shape: f32[48,32], index: 0, kind: input, shape index: {}]
  %s1 = inlined_call_operand.vmem [shape: f32[1,32], index: 1, kind: input, shape index: {}]
  %s2 = inlined_call_operand.vmem [shape: f32[1,32], index: 2, kind: input, shape index: {}, may-alias: {2,6}]
  %s3 = inlined_call_operand.vmem [shape: bf16[32,64], index: 3, kind: input, shape index: {}]
  %s4 = inlined_call_operand.vmem [shape: f32[1,64], index: 4, kind: input, shape index: {}]
  %s5 = inlined_call_operand.vmem [shape: bf16[64,32], index: 5, kind: input, shape index: {}]
  %s6 = inlined_call_operand.vmem [shape: f32[1,32], index: 6, kind: input, shape index: {}, may-alias: {2,6}]
  %s7 = inlined_call_operand.vmem [shape: f32[1,32], index: 7, kind: input, shape index: {}]
  %s8 = inlined_call_operand.vmem [shape: f32[48,32], index: 8, kind: output, shape index: {}]
  %s9 = sld [smem:[#allocation0]]
  $region42: #{beit_forward.11} parent=0
    _
  %s11 = ssub.s32 1, %s9
  %s12 = scalar_select 0, %s11, %s9
  // Predicated region
  $region2: #{beit_forward.11} parent=0 // pred_check
    _
  $region3: #{beit_forward.11} parent=0 // pred_check_branch
    %14 = sbr.rel (0) target = $region5
  $region4: #{beit_forward.11} parent=0 // pred_region
    _
  $region5: #{beit_forward.11} parent=0 // pred_fallthru
    _
  // Predicated region
  $region6: #{beit_forward.11} parent=0 // pred_check
    _
  $region7: #{beit_forward.11} parent=0 // pred_check_branch
    %16 = sbr.rel (0) target = $region9
  $region8: #{beit_forward.11} parent=0 // pred_region
    _
  $region9: #{beit_forward.11} parent=0 // pred_fallthru
    _
  // Predicated region
  $region10: #{beit_forward.11} parent=0 // pred_check
    _
  $region11: #{beit_forward.11} parent=0 // pred_check_branch
    %18 = sbr.rel (0) target = $region13
  $region12: #{beit_forward.11} parent=0 // pred_region
    _
  $region13: #{beit_forward.11} parent=0 // pred_fallthru
    _
  // Predicated region
  $region14: #{beit_forward.11} parent=0 // pred_check
    _
  $region15: #{beit_forward.11} parent=0 // pred_check_branch
    %20 = sbr.rel (0) target = $region17
  $region16: #{beit_forward.11} parent=0 // pred_region
    _
  $region17: #{beit_forward.11} parent=0 // pred_fallthru
    _
  // Predicated region
  $region18: #{beit_forward.11} parent=0 // pred_check
    _
  $region19: #{beit_forward.11} parent=0 // pred_check_branch
    %22 = sbr.rel (0) target = $region21
  $region20: #{beit_forward.11} parent=0 // pred_region
    _
  $region21: #{beit_forward.11} parent=0 // pred_fallthru
    _
  // Predicated region
  $region22: #{beit_forward.11} parent=0 // pred_check
    _
  $region23: #{beit_forward.11} parent=0 // pred_check_branch
    %24 = sbr.rel (0) target = $region25
  $region24: #{beit_forward.11} parent=0 // pred_region
    _
  $region25: #{beit_forward.11} parent=0 // pred_fallthru
    _
  // Predicated region
  $region26: #{beit_forward.11} parent=0 // pred_check
    _
  $region27: #{beit_forward.11} parent=0 // pred_check_branch
    %26 = sbr.rel (0) target = $region29
  $region28: #{beit_forward.11} parent=0 // pred_region
    _
  $region29: #{beit_forward.11} parent=0 // pred_fallthru
    _
  // Predicated region
  $region30: #{beit_forward.11} parent=0 // pred_check
    _
  $region31: #{beit_forward.11} parent=0 // pred_check_branch
    %28 = sbr.rel (0) target = $region33
  $region32: #{beit_forward.11} parent=0 // pred_region
    _
  $region33: #{beit_forward.11} parent=0 // pred_fallthru
    _
  %v30 = vld [vmem:[%s0] sm:$0xff]
  %v31 = vld [vmem:[%s0 + $0x8] sm:$0xff]
  %v32 = vld [vmem:[%s0 + $0x10] sm:$0xff]
  %v33 = vld [vmem:[%s0 + $0x18] sm:$0xff]
  %v34 = vld [vmem:[%s0 + $0x20] sm:$0xff]
  %v35 = vld [vmem:[%s0 + $0x28] sm:$0xff]
  %vm36 = vcmask 261120
  %v37 = vsel %vm36, %v30, 0.0
  %38 = vadd.xlane.f32.xlu0 %v37
  %v39 = vpop.xlane.xlu0 %38
  %v40 = vsel %vm36, %v31, 0.0
  %41 = vadd.xlane.f32.xlu0 %v40
  %v42 = vpop.xlane.xlu0 %41
  %v43 = vsel %vm36, %v32, 0.0
  %44 = vadd.xlane.f32.xlu0 %v43
  %v45 = vpop.xlane.xlu0 %44
  %v46 = vsel %vm36, %v33, 0.0
  %47 = vadd.xlane.f32.xlu0 %v46
  %v48 = vpop.xlane.xlu0 %47
  %v49 = vsel %vm36, %v34, 0.0
  %50 = vadd.xlane.f32.xlu0 %v49
  %v51 = vpop.xlane.xlu0 %50
  %v52 = vsel %vm36, %v35, 0.0
  %53 = vadd.xlane.f32.xlu0 %v52
  %v54 = vpop.xlane.xlu0 %53
  %v55 = vrcp.pop 32.0
  %v56 = vmul.f32 32.0, %v55
  %v57 = vsub.f32 1.0, %v56
  %v58 = vmul.f32 %v55, %v57
  %v59 = vadd.f32 %v55, %v58
  %vm60 = vweird.f32 %v55
  %v61 = vsel %vm60, %v55, %v59
  %v62 = vmul.f32 %v39, %v61
  %v63 = vmul.f32 %v42, %v61
  %v64 = vmul.f32 %v45, %v61
  %v65 = vmul.f32 %v48, %v61
  %v66 = vmul.f32 %v51, %v61
  %v67 = vmul.f32 %v54, %v61
  %v68 = vsub.f32 %v30, %v62
  %v69 = vsub.f32 %v31, %v63
  %v70 = vsub.f32 %v32, %v64
  %v71 = vsub.f32 %v33, %v65
  %v72 = vsub.f32 %v34, %v66
  %v73 = vsub.f32 %v35, %v67
  %v74 = vmul.f32 %v68, %v68
  %v75 = vmul.f32 %v69, %v69
  %v76 = vmul.f32 %v70, %v70
  %v77 = vmul.f32 %v71, %v71
  %v78 = vmul.f32 %v72, %v72
  %v79 = vmul.f32 %v73, %v73
  %v80 = vsel %vm36, %v74, 0.0
  %81 = vadd.xlane.f32.xlu0 %v80
  %v82 = vpop.xlane.xlu0 %81
  %v83 = vsel %vm36, %v75, 0.0
  %84 = vadd.xlane.f32.xlu0 %v83
  %v85 = vpop.xlane.xlu0 %84
  %v86 = vsel %vm36, %v76, 0.0
  %87 = vadd.xlane.f32.xlu0 %v86
  %v88 = vpop.xlane.xlu0 %87
  %v89 = vsel %vm36, %v77, 0.0
  %90 = vadd.xlane.f32.xlu0 %v89
  %v91 = vpop.xlane.xlu0 %90
  %v92 = vsel %vm36, %v78, 0.0
  %93 = vadd.xlane.f32.xlu0 %v92
  %v94 = vpop.xlane.xlu0 %93
  %v95 = vsel %vm36, %v79, 0.0
  %96 = vadd.xlane.f32.xlu0 %v95
  %v97 = vpop.xlane.xlu0 %96
  %v98 = vmul.f32 %v82, %v61
  %v99 = vmul.f32 %v85, %v61
  %v100 = vmul.f32 %v88, %v61
  %v101 = vmul.f32 %v91, %v61
  %v102 = vmul.f32 %v94, %v61
  %v103 = vmul.f32 %v97, %v61
  %v104 = vadd.f32 %v98, 1e-12
  %v105 = vadd.f32 %v99, 1e-12
  %v106 = vadd.f32 %v100, 1e-12
  %v107 = vadd.f32 %v101, 1e-12
  %v108 = vadd.f32 %v102, 1e-12
  %v109 = vadd.f32 %v103, 1e-12
  %v110 = vrsqrt.pop %v104
  %v111 = vmul.f32 %v110, %v104
  %v112 = vmul.f32 %v111, %v110
  %v113 = vmul.f32 0.5, %v112
  %v114 = vsub.f32 1.5, %v113
  %v115 = vmul.f32 %v110, %v114
  %vm116 = vweird.f32 %v104
  %vm117 = vweird.f32 %v110
  %vm118 = vmor %vm116, %vm117
  %v119 = vsel %vm118, %v110, %v115
  %v120 = vrsqrt.pop %v105
  %v121 = vmul.f32 %v120, %v105
  %v122 = vmul.f32 %v121, %v120
  %v123 = vmul.f32 0.5, %v122
  %v124 = vsub.f32 1.5, %v123
  %v125 = vmul.f32 %v120, %v124
  %vm126 = vweird.f32 %v105
  %vm127 = vweird.f32 %v120
  %vm128 = vmor %vm126, %vm127
  %v129 = vsel %vm128, %v120, %v125
  %v130 = vrsqrt.pop %v106
  %v131 = vmul.f32 %v130, %v106
  %v132 = vmul.f32 %v131, %v130
  %v133 = vmul.f32 0.5, %v132
  %v134 = vsub.f32 1.5, %v133
  %v135 = vmul.f32 %v130, %v134
  %vm136 = vweird.f32 %v106
  %vm137 = vweird.f32 %v130
  %vm138 = vmor %vm136, %vm137
  %v139 = vsel %vm138, %v130, %v135
  %v140 = vrsqrt.pop %v107
  %v141 = vmul.f32 %v140, %v107
  %v142 = vmul.f32 %v141, %v140
  %v143 = vmul.f32 0.5, %v142
  %v144 = vsub.f32 1.5, %v143
  %v145 = vmul.f32 %v140, %v144
  %vm146 = vweird.f32 %v107
  %vm147 = vweird.f32 %v140
  %vm148 = vmor %vm146, %vm147
  %v149 = vsel %vm148, %v140, %v145
  %v150 = vrsqrt.pop %v108
  %v151 = vmul.f32 %v150, %v108
  %v152 = vmul.f32 %v151, %v150
  %v153 = vmul.f32 0.5, %v152
  %v154 = vsub.f32 1.5, %v153
  %v155 = vmul.f32 %v150, %v154
  %vm156 = vweird.f32 %v108
  %vm157 = vweird.f32 %v150
  %vm158 = vmor %vm156, %vm157
  %v159 = vsel %vm158, %v150, %v155
  %v160 = vrsqrt.pop %v109
  %v161 = vmul.f32 %v160, %v109
  %v162 = vmul.f32 %v161, %v160
  %v163 = vmul.f32 0.5, %v162
  %v164 = vsub.f32 1.5, %v163
  %v165 = vmul.f32 %v160, %v164
  %vm166 = vweird.f32 %v109
  %vm167 = vweird.f32 %v160
  %vm168 = vmor %vm166, %vm167
  %v169 = vsel %vm168, %v160, %v165
  %v170 = vmul.f32 %v68, %v119
  %v171 = vmul.f32 %v69, %v129
  %v172 = vmul.f32 %v70, %v139
  %v173 = vmul.f32 %v71, %v149
  %v174 = vmul.f32 %v72, %v159
  %v175 = vmul.f32 %v73, %v169
  %v176 = vld [vmem:[%s1] sm:$0x1]
  %v178 = vperm.slane %v176, 0
  %v180 = vmul.f32 %v170, %v178
  %v181 = vmul.f32 %v171, %v178
  %v182 = vmul.f32 %v172, %v178
  %v183 = vmul.f32 %v173, %v178
  %v184 = vmul.f32 %v174, %v178
  %v185 = vmul.f32 %v175, %v178
  %v186 = vld [vmem:[%s2] sm:$0x1]
  %v188 = vperm.slane %v186, 0
  %v190 = vadd.f32 %v180, %v188
  %v191 = vadd.f32 %v181, %v188
  %v192 = vadd.f32 %v182, %v188
  %v193 = vadd.f32 %v183, %v188
  %v194 = vadd.f32 %v184, %v188
  %v195 = vadd.f32 %v185, %v188
  %v196 = vpack.c.bf16 %v191, %v190
  %v197 = vpack.c.bf16 %v193, %v192
  %v198 = vpack.c.bf16 %v195, %v194
  %v199 = vld [vmem:[%s3] sm:$0xf]
  %v200 = vld [vmem:[%s3 + $0x4] sm:$0xf]
  %v201 = vld [vmem:[%s3 + $0x8] sm:$0xf]
  %v202 = vld [vmem:[%s3 + $0xc] sm:$0xf]
  %v203 = vld [vmem:[%s4] sm:$0x1]
  %v205 = vperm.slane %v203, 0
  %v211 = vunpack.c.l.b16 %v199
  %v212 = vunpack.c.l.b16 %v200
  %v213 = vunpack.c.l.b16 %v201
  %v214 = vunpack.c.l.b16 %v202
  %v215 = vpack.c.b16 %v212, %v211
  %v216 = vpack.c.b16 %v214, %v213
  %v220 = vsel %vm36, %v196, 0
  %v223 = vsel %vm36, %v197, 0
  %v226 = vsel %vm36, %v198, 0
  %228 = vmatpush.bf16.msra.mxu0 0
  %229 = vmatpush.bf16.msra.mxu0 0
  %230 = vmatpush.bf16.msra.mxu0 0
  %231 = vmatpush.bf16.msra.mxu0 0
  %232 = vmatpush.bf16.msra.mxu0 0
  %233 = vmatpush.bf16.msra.mxu0 0
  %234 = vmatpush.bf16.msra.mxu0 %v216
  %235 = vmatpush.bf16.msra.mxu0 %v215
  %236 = vmatmul.bf16.gmra.mxu0 %v220
  %v237 = vpop.f32.mrf.mxu0
  %v238 = vadd.f32 %v205, %v237
  %v239 = vpop.f32.mrf.mxu0
  %v240 = vadd.f32 %v205, %v239
  %241 = vmatmul.bf16.gmra.mxu0 %v223
  %v242 = vpop.f32.mrf.mxu0
  %v243 = vadd.f32 %v205, %v242
  %v244 = vpop.f32.mrf.mxu0
  %v245 = vadd.f32 %v205, %v244
  %246 = vmatmul.bf16.gmra.mxu0 %v226
  %v247 = vpop.f32.mrf.mxu0
  %v248 = vadd.f32 %v205, %v247
  %v249 = vpop.f32.mrf.mxu0
  %v250 = vadd.f32 %v205, %v249
  %251 = vdwg.mxu0
  %v252 = vmul.f32 %v238, 0.5
  %v253 = vmul.f32 %v240, 0.5
  %v254 = vmul.f32 %v243, 0.5
  %v255 = vmul.f32 %v245, 0.5
  %v256 = vmul.f32 %v248, 0.5
  %v257 = vmul.f32 %v250, 0.5
  %v258 = vmul.f32 %v238, 0.044715
  %v259 = vmul.f32 %v240, 0.044715
  %v260 = vmul.f32 %v243, 0.044715
  %v261 = vmul.f32 %v245, 0.044715
  %v262 = vmul.f32 %v248, 0.044715
  %v263 = vmul.f32 %v250, 0.044715
  %v264 = vmul.f32 %v258, %v238
  %v265 = vmul.f32 %v259, %v240
  %v266 = vmul.f32 %v260, %v243
  %v267 = vmul.f32 %v261, %v245
  %v268 = vmul.f32 %v262, %v248
  %v269 = vmul.f32 %v263, %v250
  %v270 = vmul.f32 %v264, %v238
  %v271 = vmul.f32 %v265, %v240
  %v272 = vmul.f32 %v266, %v243
  %v273 = vmul.f32 %v267, %v245
  %v274 = vmul.f32 %v268, %v248
  %v275 = vmul.f32 %v269, %v250
  %v276 = vadd.f32 %v238, %v270
  %v277 = vadd.f32 %v240, %v271
  %v278 = vadd.f32 %v243, %v272
  %v279 = vadd.f32 %v245, %v273
  %v280 = vadd.f32 %v248, %v274
  %v281 = vadd.f32 %v250, %v275
  %v282 = vmul.f32 %v276, 0.7978846
  %v283 = vmul.f32 %v277, 0.7978846
  %v284 = vmul.f32 %v278, 0.7978846
  %v285 = vmul.f32 %v279, 0.7978846
  %v286 = vmul.f32 %v280, 0.7978846
  %v287 = vmul.f32 %v281, 0.7978846
  %v288 = vtanh.pop %v282
  %v289 = vtanh.pop %v283
  %v290 = vtanh.pop %v284
  %v291 = vtanh.pop %v285
  %v292 = vtanh.pop %v286
  %v293 = vtanh.pop %v287
  %v294 = vadd.f32 %v288, 1.0
  %v295 = vadd.f32 %v289, 1.0
  %v296 = vadd.f32 %v290, 1.0
  %v297 = vadd.f32 %v291, 1.0
  %v298 = vadd.f32 %v292, 1.0
  %v299 = vadd.f32 %v293, 1.0
  %v300 = vmul.f32 %v252, %v294
  %v301 = vmul.f32 %v253, %v295
  %v302 = vmul.f32 %v254, %v296
  %v303 = vmul.f32 %v255, %v297
  %v304 = vmul.f32 %v256, %v298
  %v305 = vmul.f32 %v257, %v299
  %v306 = vpack.c.bf16 %v301, %v300
  %v307 = vpack.c.bf16 %v303, %v302
  %v308 = vpack.c.bf16 %v305, %v304
  %v309 = vld [vmem:[%s5] sm:$0xf]
  %v310 = vld [vmem:[%s5 + $0x4] sm:$0xf]
  %v311 = vld [vmem:[%s5 + $0x8] sm:$0xf]
  %v312 = vld [vmem:[%s5 + $0xc] sm:$0xf]
  %v313 = vld [vmem:[%s5 + $0x10] sm:$0xf]
  %v314 = vld [vmem:[%s5 + $0x14] sm:$0xf]
  %v315 = vld [vmem:[%s5 + $0x18] sm:$0xf]
  %v316 = vld [vmem:[%s5 + $0x1c] sm:$0xf]
  %v317 = vld [vmem:[%s6] sm:$0x1]
  %v319 = vperm.slane %v317, 0
  %v329 = vunpack.c.l.b16 %v309
  %v330 = vunpack.c.l.b16 %v310
  %v331 = vunpack.c.l.b16 %v311
  %v332 = vunpack.c.l.b16 %v312
  %v333 = vunpack.c.l.b16 %v313
  %v334 = vunpack.c.l.b16 %v314
  %v335 = vunpack.c.l.b16 %v315
  %v336 = vunpack.c.l.b16 %v316
  %v337 = vpack.c.b16 %v330, %v329
  %v338 = vpack.c.b16 %v332, %v331
  %v339 = vpack.c.b16 %v334, %v333
  %v340 = vpack.c.b16 %v336, %v335
  %vm345 = vcmask 523264
  %v347 = vsel %vm345, %v306, 0
  %v350 = vsel %vm345, %v307, 0
  %v353 = vsel %vm345, %v308, 0
  %355 = vmatpush.bf16.msra.mxu0 0
  %356 = vmatpush.bf16.msra.mxu0 0
  %357 = vmatpush.bf16.msra.mxu0 0
  %358 = vmatpush.bf16.msra.mxu0 0
  %359 = vmatpush.bf16.msra.mxu0 %v340
  %360 = vmatpush.bf16.msra.mxu0 %v339
  %361 = vmatpush.bf16.msra.mxu0 %v338
  %362 = vmatpush.bf16.msra.mxu0 %v337
  %363 = vmatmul.bf16.gmra.mxu0 %v347
  %v364 = vpop.f32.mrf.mxu0
  %v365 = vadd.f32 %v319, %v364
  %v366 = vpop.f32.mrf.mxu0
  %v367 = vadd.f32 %v319, %v366
  %368 = vmatmul.bf16.gmra.mxu0 %v350
  %v369 = vpop.f32.mrf.mxu0
  %v370 = vadd.f32 %v319, %v369
  %v371 = vpop.f32.mrf.mxu0
  %v372 = vadd.f32 %v319, %v371
  %373 = vmatmul.bf16.gmra.mxu0 %v353
  %v374 = vpop.f32.mrf.mxu0
  %v375 = vadd.f32 %v319, %v374
  %v376 = vpop.f32.mrf.mxu0
  %v377 = vadd.f32 %v319, %v376
  %378 = vdwg.mxu0
  %v379 = vld [vmem:[%s7] sm:$0x1]
  %v381 = vperm.slane %v379, 0
  %v383 = vmul.f32 %v381, %v365
  %v384 = vmul.f32 %v381, %v367
  %v385 = vmul.f32 %v381, %v370
  %v386 = vmul.f32 %v381, %v372
  %v387 = vmul.f32 %v381, %v375
  %v388 = vmul.f32 %v381, %v377
  %v389 = vadd.f32 %v30, %v383
  %v390 = vadd.f32 %v31, %v384
  %v391 = vadd.f32 %v32, %v385
  %v392 = vadd.f32 %v33, %v386
  %v393 = vadd.f32 %v34, %v387
  %v394 = vadd.f32 %v35, %v388
  %395 = vst.msk [vmem:[%s8] sm:$0xff] %vm36, %v389
  %396 = vst.msk [vmem:[%s8 + $0x8] sm:$0xff] %vm36, %v390
  %397 = vst.msk [vmem:[%s8 + $0x10] sm:$0xff] %vm36, %v391
  %398 = vst.msk [vmem:[%s8 + $0x18] sm:$0xff] %vm36, %v392
  %399 = vst.msk [vmem:[%s8 + $0x20] sm:$0xff] %vm36, %v393
  %400 = vst.msk [vmem:[%s8 + $0x28] sm:$0xff] %vm36, %v394
  // Predicated region
  $region34: #{beit_forward.11} parent=0 // pred_check
    _
  $region35: #{beit_forward.11} parent=0 // pred_check_branch
    %402 = sbr.rel (0) target = $region37
  $region36: #{beit_forward.11} parent=0 // pred_region
    _
  $region37: #{beit_forward.11} parent=0 // pred_fallthru
    _
  // Predicated region
  $region38: #{beit_forward.11} parent=0 // pred_check
    _
  $region39: #{beit_forward.11} parent=0 // pred_check_branch
    %404 = sbr.rel (0) target = $region41
  $region40: #{beit_forward.11} parent=0 // pred_region
    _
  $region41: #{beit_forward.11} parent=0 // pred_fallthru
    _

// kernel: beit_forward.15
$region0: #{beit_forward.15}
  #allocation0 [shape = 'u32[]', space=smem, size = 0x4, offset = 0x4, fixed_abs, tag = 'smem constant byte address 0x4 - core index']
  #allocation1 [shape = 'u32[72,128]{1,0:T(1,128)}', space=vmem, size = 0x9000, scoped, tag = 'internal scratch']
  %s0 = inlined_call_operand.vmem [shape: f32[2,24,32], index: 0, kind: input, shape index: {}]
  %s1 = inlined_call_operand.vmem [shape: f32[1,32], index: 1, kind: input, shape index: {}]
  %s2 = inlined_call_operand.vmem [shape: f32[1,32], index: 2, kind: input, shape index: {}]
  %s3 = inlined_call_operand.vmem [shape: bf16[32,128], index: 3, kind: input, shape index: {}]
  %s4 = inlined_call_operand.vmem [shape: f32[1,128], index: 4, kind: input, shape index: {}]
  %s5 = inlined_call_operand.hbm [shape: f32[2,128], index: 5, kind: output, shape index: {}]
  %s6 = sld [smem:[#allocation0]]
  $region30: #{beit_forward.15} parent=0
    _
  %s8 = ssub.s32 1, %s6
  %s9 = scalar_select 0, %s8, %s6
  $region1: #{beit_forward.15} parent=0
    #allocation2 [shape = 'u8[1024]{0}', space=vmem, size = 0x400, scoped, tag = 'output window, operand 0, single buffered']
    #allocation3 [shape = 's32[1]{0}', space=sflag, size = 0x4, scoped, tag = 'scoped memory for beit_forward.15']
    %10 = vsyncpa [#allocation3], 0
    // Predicated region
    $region2: #{beit_forward.15} parent=1 // pred_check
      _
    $region3: #{beit_forward.15} parent=1 // pred_check_branch
      %12 = sbr.rel (0) target = $region5
    $region4: #{beit_forward.15} parent=1 // pred_region
      _
    $region5: #{beit_forward.15} parent=1 // pred_fallthru
      _
    // Predicated region
    $region6: #{beit_forward.15} parent=1 // pred_check
      _
    $region7: #{beit_forward.15} parent=1 // pred_check_branch
      %14 = sbr.rel (0) target = $region9
    $region8: #{beit_forward.15} parent=1 // pred_region
      _
    $region9: #{beit_forward.15} parent=1 // pred_fallthru
      _
    // Predicated region
    $region10: #{beit_forward.15} parent=1 // pred_check
      _
    $region11: #{beit_forward.15} parent=1 // pred_check_branch
      %16 = sbr.rel (0) target = $region13
    $region12: #{beit_forward.15} parent=1 // pred_region
      _
    $region13: #{beit_forward.15} parent=1 // pred_fallthru
      _
    // Predicated region
    $region14: #{beit_forward.15} parent=1 // pred_check
      _
    $region15: #{beit_forward.15} parent=1 // pred_check_branch
      %18 = sbr.rel (0) target = $region17
    $region16: #{beit_forward.15} parent=1 // pred_region
      _
    $region17: #{beit_forward.15} parent=1 // pred_fallthru
      _
    // Predicated region
    $region18: #{beit_forward.15} parent=1 // pred_check
      _
    $region19: #{beit_forward.15} parent=1 // pred_check_branch
      %20 = sbr.rel (0) target = $region21
    $region20: #{beit_forward.15} parent=1 // pred_region
      _
    $region21: #{beit_forward.15} parent=1 // pred_fallthru
      _
    %v22 = vld [vmem:[%s0] sm:$0xff]
    %v23 = vld [vmem:[%s0 + $0x8] sm:$0xff]
    %v24 = vld [vmem:[%s0 + $0x10] sm:$0xff]
    %v25 = vld [vmem:[%s0 + $0x18] sm:$0xff]
    %v26 = vld [vmem:[%s0 + $0x20] sm:$0xff]
    %v27 = vld [vmem:[%s0 + $0x28] sm:$0xff]
    %v28 = vlaneseq
    %v29 = vshrl.u32 %v28, 7
    %v30 = vadd.s32 %v29, 8
    %v31 = vadd.s32 %v29, 16
    %vm32 = vcmp.ge.s32.totalorder %v29, 1
    %vm33 = vcmp.ge.s32.totalorder %v30, 1
    %vm34 = vcmp.ge.s32.totalorder %v31, 1
    %vm35 = vcmp.le.s32.totalorder %v29, 16
    %vm36 = vcmp.le.s32.totalorder %v30, 16
    %vm37 = vcmp.le.s32.totalorder %v31, 16
    %vm38 = vmand %vm32, %vm35
    %vm39 = vmand %vm33, %vm36
    %vm40 = vmand %vm34, %vm37
    %v41 = vsel %vm38, 1, 0
    %v42 = vsel %vm39, 1, 0
    %v43 = vsel %vm40, 1, 0
    %v44 = vcvt.s32.f32 %v41
    %v45 = vcvt.s32.f32 %v42
    %v46 = vcvt.s32.f32 %v43
    %v47 = vmul.f32 %v22, %v44
    %v48 = vmul.f32 %v23, %v45
    %v49 = vmul.f32 %v24, %v46
    %v50 = vmul.f32 %v25, %v44
    %v51 = vmul.f32 %v26, %v45
    %v52 = vmul.f32 %v27, %v46
    %vm53 = vcmask 261120
    %v54 = vsel %vm53, %v47, 0.0
    %v55 = vsel %vm53, %v48, 0.0
    %v56 = vadd.f32 %v54, %v55
    %v57 = vsel %vm53, %v49, 0.0
    %v58 = vadd.f32 %v56, %v57
    %v59 = vrot.slane %v58, 4
    %v60 = vadd.f32 %v58, %v59
    %v61 = vrot.slane %v60, 2
    %v62 = vadd.f32 %v60, %v61
    %v63 = vrot.slane %v62, 1
    %v64 = vadd.f32 %v62, %v63
    %v65 = vsel %vm53, %v50, 0.0
    %v66 = vsel %vm53, %v51, 0.0
    %v67 = vadd.f32 %v65, %v66
    %v68 = vsel %vm53, %v52, 0.0
    %v69 = vadd.f32 %v67, %v68
    %v70 = vrot.slane %v69, 4
    %v71 = vadd.f32 %v69, %v70
    %v72 = vrot.slane %v71, 2
    %v73 = vadd.f32 %v71, %v72
    %v74 = vrot.slane %v73, 1
    %v75 = vadd.f32 %v73, %v74
    %v76 = vmul.f32 %v64, 0.0625
    %v77 = vmul.f32 %v75, 0.0625
    %vm80 = vcmask 1041409
    %v81 = vsel %vm80, %v77, %v76
    %vm83 = vcmask 254976
    %v84 = vsel %vm83, %v81, 0.0
    %85 = vadd.xlane.f32.xlu0 %v84
    %v86 = vpop.xlane.xlu0 %85
    %v87 = vrcp.pop 32.0
    %v88 = vmul.f32 32.0, %v87
    %v89 = vsub.f32 1.0, %v88
    %v90 = vmul.f32 %v87, %v89
    %v91 = vadd.f32 %v87, %v90
    %vm92 = vweird.f32 %v87
    %v93 = vsel %vm92, %v87, %v91
    %v94 = vmul.f32 %v86, %v93
    %v96 = vrot.slane %v94, 1
    %v99 = vsub.f32 %v76, %v94
    %v100 = vsub.f32 %v77, %v96
    %v101 = vmul.f32 %v99, %v99
    %v102 = vmul.f32 %v100, %v100
    %v105 = vrot.slane %v102, 7
    %v106 = vsel %vm80, %v105, %v101
    %v108 = vsel %vm83, %v106, 0.0
    %109 = vadd.xlane.f32.xlu0 %v108
    %v110 = vpop.xlane.xlu0 %109
    %v111 = vmul.f32 %v110, %v93
    %v112 = vadd.f32 %v111, 1e-12
    %v113 = vrsqrt.pop %v112
    %v114 = vmul.f32 %v113, %v112
    %v115 = vmul.f32 %v114, %v113
    %v116 = vmul.f32 0.5, %v115
    %v117 = vsub.f32 1.5, %v116
    %v118 = vmul.f32 %v113, %v117
    %vm119 = vweird.f32 %v112
    %vm120 = vweird.f32 %v113
    %vm121 = vmor %vm119, %vm120
    %v122 = vsel %vm121, %v113, %v118
    %v124 = vrot.slane %v122, 1
    %v127 = vmul.f32 %v99, %v122
    %v128 = vmul.f32 %v100, %v124
    %v129 = vld [vmem:[%s1] sm:$0x1]
    %v131 = vperm.slane %v129, 0
    %v133 = vmul.f32 %v127, %v131
    %v134 = vmul.f32 %v128, %v131
    %v135 = vld [vmem:[%s2] sm:$0x1]
    %v137 = vperm.slane %v135, 0
    %v139 = vadd.f32 %v133, %v137
    %v140 = vadd.f32 %v134, %v137
    %v141 = vpack.c.bf16 %v139, %v139
    %v142 = vpack.c.bf16 %v140, %v140
    %v143 = vld [vmem:[%s3] sm:$0xf]
    %v144 = vld [vmem:[%s3 + $0x4] sm:$0xf]
    %v145 = vld [vmem:[%s3 + $0x8] sm:$0xf]
    %v146 = vld [vmem:[%s3 + $0xc] sm:$0xf]
    %v147 = vld [vmem:[%s4] sm:$0x1]
    %v149 = vperm.slane %v147, 0
    %v153 = vunpack.c.l.b16 %v141
    %v154 = vunpack.c.l.b16 %v142
    %v155 = vrot.slane %v154, 7
    %v156 = vsel %vm80, %v155, %v153
    %v157 = vpack.c.b16 %v156, %v156
    %v162 = vunpack.c.l.b16 %v143
    %v163 = vunpack.c.l.b16 %v144
    %v164 = vunpack.c.l.b16 %v145
    %v165 = vunpack.c.l.b16 %v146
    %v166 = vpack.c.b16 %v163, %v162
    %v167 = vpack.c.b16 %v165, %v164
    %v171 = vsel %vm53, %v157, 0
    %173 = vmatpush.bf16.msra.mxu0 0
    %174 = vmatpush.bf16.msra.mxu0 0
    %175 = vmatpush.bf16.msra.mxu0 0
    %176 = vmatpush.bf16.msra.mxu0 0
    %177 = vmatpush.bf16.msra.mxu0 0
    %178 = vmatpush.bf16.msra.mxu0 0
    %179 = vmatpush.bf16.msra.mxu0 %v167
    %180 = vmatpush.bf16.msra.mxu0 %v166
    %181 = vmatmul.bf16.gmra.mxu0 %v171
    %v182 = vpop.f32.mrf.mxu0
    %v183 = vadd.f32 %v149, %v182
    %v184 = vpop.f32.mrf.mxu0
    %185 = vdwg.mxu0
    %186 = vst [vmem:[#allocation2] sm:$0x3] %v183
    // Predicated region
    $region22: #{beit_forward.15} parent=1 // pred_check
      _
    $region23: #{beit_forward.15} parent=1 // pred_check_branch
      %188 = sbr.rel (0) target = $region25
    $region24: #{beit_forward.15} parent=1 // pred_region
      %190 = vsyncadd [#allocation3], 0
      %s192 = sshll.u32 [#allocation2], 4
      %s193 = int_to_ptr.vmem [resolvable:$true] %s192
      %s194 = sshll.u32 %s5, 4
      %s195 = int_to_ptr.hbm [resolvable:$true] %s194
      %197 = dma.vmem_to_hbm [thread:$0]  %s193, 32, %s195, [#allocation3]
    $region25: #{beit_forward.15} parent=1 // pred_fallthru
      _
    // Predicated region
    $region26: #{beit_forward.15} parent=1 // pred_check
      _
    $region27: #{beit_forward.15} parent=1 // pred_check_branch
      %199 = sbr.rel (0) target = $region29
    $region28: #{beit_forward.15} parent=1 // pred_region
      %201 = dma.done [#allocation3], 32
    $region29: #{beit_forward.15} parent=1 // pred_fallthru
      _
    %202 = vsyncpa [#allocation3], 1

</llo_original>
